<compile_context>
chip_gen: v7x
topology: tpu7x:2x2x1
jax: 0.10.0
libtpu: 0.0.40
codegen_flags: <defaults>
</compile_context>

<pallas_src>
import math
import functools

import jax
import jax.numpy as jnp
from jax.experimental import pallas as pl
from jax.experimental.pallas import tpu as pltpu

_EPS = 1e-6


def _layernorm(x, gamma, beta, eps=_EPS):
    mu = jnp.mean(x, axis=-1, keepdims=True)
    xc = x - mu
    var = jnp.mean(xc * xc, axis=-1, keepdims=True)
    inv = jax.lax.rsqrt(var + eps)
    return xc * inv * gamma + beta


def joint_encoder_kernel(
    # activations (one batch element per grid step along axis 0)
    r1_ref, r2_ref,
    # per-head attention weights (head = leading dim, sliced by BlockSpec DMA)
    wq_ref, bq_ref, wkv_ref, bkv_ref, wo_ref,
    # FFN / outer linear weights (full blocks, bf16)
    w1_ref, b1_ref, w2_ref, wl_ref,
    # packed f32 vectors: rows = [bo, b2, bl] / [g_attn, g_ffn, g_out] / betas
    bias_d_ref, gamma_ref, beta_ref,
    # output
    o_ref,
    # scratch: per-batch attention-output accumulator
    acc_ref,
    *, d_k, scale,
):
    h = pl.program_id(1)
    last_h = pl.num_programs(1) - 1

    @pl.when(h == 0)
    def _():
        acc_ref[...] = jnp.zeros_like(acc_ref)

    x1 = r1_ref[0]                              # (Lq, D) f32 (query stream)
    x2 = r2_ref[0]                              # (Lk, D) f32 (key/value stream)
    x1_bf = x1.astype(jnp.bfloat16)
    x2_bf = x2.astype(jnp.bfloat16)

    # ---- per-head projections (bf16 MXU, f32 accumulation) -----------------
    q = jnp.dot(x1_bf, wq_ref[0], preferred_element_type=jnp.float32) + bq_ref[0]
    kv = jnp.dot(x2_bf, wkv_ref[0], preferred_element_type=jnp.float32) + bkv_ref[0]
    k = kv[:, :d_k]                             # (Lk, d_k)
    v = kv[:, d_k:]                             # (Lk, d_v)

    # ---- scaled dot-product attention (no materialized K^T) ----------------
    s = jax.lax.dot_general(
        q.astype(jnp.bfloat16), k.astype(jnp.bfloat16),
        dimension_numbers=(((1,), (1,)), ((), ())),
        preferred_element_type=jnp.float32,
    ) * scale                                   # (Lq, Lk) f32
    m = jnp.max(s, axis=-1, keepdims=True)
    e = jnp.exp(s - m)
    p = e * pl.reciprocal(jnp.sum(e, axis=-1, keepdims=True), approx=True)

    ctx = jnp.dot(p.astype(jnp.bfloat16), v.astype(jnp.bfloat16),
                  preferred_element_type=jnp.float32)        # (Lq, d_v) f32

    # fold this head through its slice of W_o and accumulate into scratch
    acc_ref[...] += jnp.dot(ctx.astype(jnp.bfloat16), wo_ref[0],
                            preferred_element_type=jnp.float32)   # (Lq, D)

    # ---- epilogue: once per batch element, on the last head ----------------
    @pl.when(h == last_h)
    def _():
        bias_d = bias_d_ref[...]      # (3, D): rows [bo, b2, bl]
        gamma = gamma_ref[...]        # (3, D): rows [g_attn, g_ffn, g_out]
        beta = beta_ref[...]          # (3, D): rows [b_attn, b_ffn, b_out]

        attn = acc_ref[...] + bias_d[0:1, :]
        x = _layernorm(x1 + attn, gamma[0:1, :], beta[0:1, :])

        h1 = jnp.dot(x.astype(jnp.bfloat16), w1_ref[...],
                     preferred_element_type=jnp.float32) + b1_ref[...]
        h1 = jnp.maximum(h1, 0.0)
        ff = jnp.dot(h1.astype(jnp.bfloat16), w2_ref[...],
                     preferred_element_type=jnp.float32) + bias_d[1:2, :]
        x = _layernorm(x + ff, gamma[1:2, :], beta[1:2, :])

        y = jnp.dot(x.astype(jnp.bfloat16), wl_ref[...],
                    preferred_element_type=jnp.float32) + bias_d[2:3, :]
        y = _layernorm(y, gamma[2:3, :], beta[2:3, :])

        o_ref[0] = y.astype(o_ref.dtype)


def joint_encoder_forward(repr1, repr2, params, *, n_heads, d_k, d_v,
                          padding_mask=None):
    assert padding_mask is None, "padding_mask is not supported by this kernel"
    B, Lq, D = repr1.shape
    Bk, Lk, Dk = repr2.shape
    assert Bk == B and Dk == D
    F = params["w1"].shape[-1]

    bf16, f32 = jnp.bfloat16, jnp.float32

    # ---- weight packing: head -> leading dim, K/V fused, bf16 matmul ------
    wq3 = params["wq"].reshape(D, n_heads, d_k).transpose(1, 0, 2).astype(bf16)
    wk3 = params["wk"].reshape(D, n_heads, d_k).transpose(1, 0, 2)
    wv3 = params["wv"].reshape(D, n_heads, d_v).transpose(1, 0, 2)
    wkv3 = jnp.concatenate([wk3, wv3], axis=-1).astype(bf16)   # (H, D, d_k+d_v)
    bq3 = params["bq"].reshape(n_heads, 1, d_k).astype(f32)
    bk3 = params["bk"].reshape(n_heads, 1, d_k)
    bv3 = params["bv"].reshape(n_heads, 1, d_v)
    bkv3 = jnp.concatenate([bk3, bv3], axis=-1).astype(f32)    # (H, 1, d_k+d_v)
    wo3 = params["wo"].reshape(n_heads, d_v, D).astype(bf16)   # (H, d_v, D)

    w1 = params["w1"].astype(bf16)
    b1 = params["b1"].astype(f32)
    w2 = params["w2"].astype(bf16)
    wl = params["wl"].astype(bf16)

    bias_d = jnp.concatenate(
        [params["bo"], params["b2"], params["bl"]], axis=0).astype(f32)
    gamma = jnp.concatenate(
        [params["g_attn"], params["g_ffn"], params["g_out"]], axis=0).astype(f32)
    beta = jnp.concatenate(
        [params["b_attn"], params["b_ffn"], params["b_out"]], axis=0).astype(f32)

    weights = [wq3, bq3, wkv3, bkv3, wo3, w1, b1, w2, wl, bias_d, gamma, beta]

    def full_spec(a):  # all full-block weights here are 2-D
        return pl.BlockSpec(a.shape, lambda b, h: (0, 0))

    in_specs = [
        pl.BlockSpec((1, Lq, D), lambda b, h: (b, 0, 0)),          # repr1
        pl.BlockSpec((1, Lk, D), lambda b, h: (b, 0, 0)),          # repr2
        pl.BlockSpec((1, D, d_k), lambda b, h: (h, 0, 0)),         # wq3
        pl.BlockSpec((1, 1, d_k), lambda b, h: (h, 0, 0)),         # bq3
        pl.BlockSpec((1, D, d_k + d_v), lambda b, h: (h, 0, 0)),   # wkv3
        pl.BlockSpec((1, 1, d_k + d_v), lambda b, h: (h, 0, 0)),   # bkv3
        pl.BlockSpec((1, d_v, D), lambda b, h: (h, 0, 0)),         # wo3
        full_spec(w1), full_spec(b1), full_spec(w2), full_spec(wl),
        full_spec(bias_d), full_spec(gamma), full_spec(beta),
    ]
    out_spec = pl.BlockSpec((1, Lq, D), lambda b, h: (b, 0, 0))

    # advisory cost estimate (helps XLA schedule / overlap surrounding ops)
    flops = 2 * B * (
        Lq * D * (n_heads * d_k)                 # Q projection
        + Lk * D * (n_heads * (d_k + d_v))       # fused K/V projection
        + n_heads * Lq * Lk * (d_k + d_v)        # scores + context
        + Lq * (n_heads * d_v) * D               # output projection
        + Lq * D * F + Lq * F * D                # FFN
        + Lq * D * D                             # outer linear
    )
    transcendentals = B * (n_heads * Lq * Lk + 3 * Lq)
    bytes_accessed = int(
        repr1.size * repr1.dtype.itemsize
        + repr2.size * repr2.dtype.itemsize
        + B * Lq * D * 4
        + sum(w.size * w.dtype.itemsize for w in weights))

    kernel = functools.partial(
        joint_encoder_kernel, d_k=d_k, scale=1.0 / math.sqrt(d_k))

    return pl.pallas_call(
        kernel,
        out_shape=jax.ShapeDtypeStruct((B, Lq, D), jnp.float32),
        grid_spec=pltpu.PrefetchScalarGridSpec(
            num_scalar_prefetch=0,
            grid=(B, n_heads),
            in_specs=in_specs,
            out_specs=out_spec,
            scratch_shapes=[pltpu.VMEM((Lq, D), jnp.float32)],
        ),
        compiler_params=pltpu.CompilerParams(
            dimension_semantics=("parallel", "arbitrary"),
            vmem_limit_bytes=48 * 1024 * 1024,
        ),
        cost_estimate=pl.CostEstimate(
            flops=flops,
            transcendentals=transcendentals,
            bytes_accessed=bytes_accessed,
        ),
    )(repr1.astype(f32), repr2.astype(f32), *weights)


def init_params(key, d_model, d_ffn, n_heads, d_k, d_v):
    ks = jax.random.split(key, 8)
    s = 0.02

    def mat(k, shape):
        return jax.random.normal(k, shape, dtype=jnp.float32) * s

    return {
        # attention projections (stored [in, out] = W.T of nn.Linear)
        "wq": mat(ks[0], (d_model, n_heads * d_k)),
        "bq": jnp.zeros((1, n_heads * d_k), jnp.float32),
        "wk": mat(ks[1], (d_model, n_heads * d_k)),
        "bk": jnp.zeros((1, n_heads * d_k), jnp.float32),
        "wv": mat(ks[2], (d_model, n_heads * d_v)),
        "bv": jnp.zeros((1, n_heads * d_v), jnp.float32),
        "wo": mat(ks[3], (n_heads * d_v, d_model)),
        "bo": jnp.zeros((1, d_model), jnp.float32),
        "g_attn": jnp.ones((1, d_model), jnp.float32),
        "b_attn": jnp.zeros((1, d_model), jnp.float32),
        # FFN
        "w1": mat(ks[4], (d_model, d_ffn)),
        "b1": jnp.zeros((1, d_ffn), jnp.float32),
        "w2": mat(ks[5], (d_ffn, d_model)),
        "b2": jnp.zeros((1, d_model), jnp.float32),
        "g_ffn": jnp.ones((1, d_model), jnp.float32),
        "b_ffn": jnp.zeros((1, d_model), jnp.float32),
        # outer linear + layernorm
        "wl": mat(ks[6], (d_model, d_model)),
        "bl": jnp.zeros((1, d_model), jnp.float32),
        "g_out": jnp.ones((1, d_model), jnp.float32),
        "b_out": jnp.zeros((1, d_model), jnp.float32),
    }


if __name__ == "__main__":
    # small, module-consistent shapes
    B, Lq, Lk = 2, 8, 8
    d_model, d_ffn = 32, 64
    n_heads, d_k, d_v = 4, 8, 8

    key = jax.random.PRNGKey(0)
    k1, k2, kp = jax.random.split(key, 3)
    repr1 = jax.random.normal(k1, (B, Lq, d_model), dtype=jnp.float32)
    repr2 = jax.random.normal(k2, (B, Lk, d_model), dtype=jnp.float32)
    params = init_params(kp, d_model, d_ffn, n_heads, d_k, d_v)

    out = joint_encoder_forward(
        repr1, repr2, params, n_heads=n_heads, d_k=d_k, d_v=d_v)
    jax.block_until_ready(out)
    assert out.shape == (B, Lq, d_model)
    assert bool(jnp.all(jnp.isfinite(out)))
    print("KERNEL_OK")
</pallas_src>

<mosaic_0001>
module attributes {stable_mosaic.version = 11 : i64} {
  func.func @joint_encoder_kernel(%arg0: i32, %arg1: i32, %arg2: memref<1x8x32xf32, #tpu.memory_space<vmem>>, %arg3: memref<1x8x32xf32, #tpu.memory_space<vmem>>, %arg4: memref<1x32x8xbf16, #tpu.memory_space<vmem>>, %arg5: memref<1x1x8xf32, #tpu.memory_space<vmem>>, %arg6: memref<1x32x16xbf16, #tpu.memory_space<vmem>>, %arg7: memref<1x1x16xf32, #tpu.memory_space<vmem>>, %arg8: memref<1x8x32xbf16, #tpu.memory_space<vmem>>, %arg9: memref<32x64xbf16, #tpu.memory_space<vmem>>, %arg10: memref<1x64xf32, #tpu.memory_space<vmem>>, %arg11: memref<64x32xbf16, #tpu.memory_space<vmem>>, %arg12: memref<32x32xbf16, #tpu.memory_space<vmem>>, %arg13: memref<3x32xf32, #tpu.memory_space<vmem>>, %arg14: memref<3x32xf32, #tpu.memory_space<vmem>>, %arg15: memref<3x32xf32, #tpu.memory_space<vmem>>, %arg16: memref<1x8x32xf32, #tpu.memory_space<vmem>>, %arg17: memref<8x32xf32, #tpu.memory_space<vmem>>) attributes {dimension_semantics = [#tpu.dimension_semantics<parallel>, #tpu.dimension_semantics<arbitrary>], iteration_bounds = array<i64: 2, 4>, scalar_prefetch = 0 : i64, scratch_operands = 1 : i64, tpu.core_type = #tpu.core_type<tc>, window_params = [{transform_indices = @transform_0, window_bounds = array<i64: 1, 8, 32>}, {transform_indices = @transform_1, window_bounds = array<i64: 1, 8, 32>}, {transform_indices = @transform_2, window_bounds = array<i64: 1, 32, 8>}, {transform_indices = @transform_3, window_bounds = array<i64: 1, 1, 8>}, {transform_indices = @transform_4, window_bounds = array<i64: 1, 32, 16>}, {transform_indices = @transform_5, window_bounds = array<i64: 1, 1, 16>}, {transform_indices = @transform_6, window_bounds = array<i64: 1, 8, 32>}, {pipeline_mode = #tpu.pipeline_mode<synchronous>, transform_indices = @transform_7, window_bounds = array<i64: 32, 64>}, {pipeline_mode = #tpu.pipeline_mode<synchronous>, transform_indices = @transform_8, window_bounds = array<i64: 1, 64>}, {pipeline_mode = #tpu.pipeline_mode<synchronous>, transform_indices = @transform_9, window_bounds = array<i64: 64, 32>}, {pipeline_mode = #tpu.pipeline_mode<synchronous>, transform_indices = @transform_10, window_bounds = array<i64: 32, 32>}, {pipeline_mode = #tpu.pipeline_mode<synchronous>, transform_indices = @transform_11, window_bounds = array<i64: 3, 32>}, {pipeline_mode = #tpu.pipeline_mode<synchronous>, transform_indices = @transform_12, window_bounds = array<i64: 3, 32>}, {pipeline_mode = #tpu.pipeline_mode<synchronous>, transform_indices = @transform_13, window_bounds = array<i64: 3, 32>}, {transform_indices = @transform_14, window_bounds = array<i64: 1, 8, 32>}]} {
    %c0_i32 = arith.constant 0 : i32
    %0 = arith.cmpi eq, %arg1, %c0_i32 : i32
    %1 = arith.extui %0 : i1 to i32
    %c0_i32_0 = arith.constant 0 : i32
    %2 = arith.cmpi ne, %1, %c0_i32_0 : i32
    scf.if %2 {
      %cst_33 = arith.constant 0.000000e+00 : f32
      %53 = vector.broadcast %cst_33 : f32 to vector<8x32xf32>
      %c0_34 = arith.constant 0 : index
      %c0_35 = arith.constant 0 : index
      %54 = vector.load %arg17[%c0_34, %c0_35] : memref<8x32xf32, #tpu.memory_space<vmem>>, vector<8x32xf32>
      tpu.vector_store %arg17[%c0_34, %c0_35], %53 {strides = array<i32>} : memref<8x32xf32, #tpu.memory_space<vmem>>, vector<8x32xf32>,
    } else {
    }
    %c0 = arith.constant 0 : index
    %c0_1 = arith.constant 0 : index
    %c0_2 = arith.constant 0 : index
    %3 = vector.load %arg2[%c0, %c0_1, %c0_2] : memref<1x8x32xf32, #tpu.memory_space<vmem>>, vector<1x8x32xf32>
    %4 = vector.shape_cast %3 : vector<1x8x32xf32> to vector<8x32xf32>
    %c0_3 = arith.constant 0 : index
    %c0_4 = arith.constant 0 : index
    %c0_5 = arith.constant 0 : index
    %5 = vector.load %arg3[%c0_3, %c0_4, %c0_5] : memref<1x8x32xf32, #tpu.memory_space<vmem>>, vector<1x8x32xf32>
    %6 = vector.shape_cast %5 : vector<1x8x32xf32> to vector<8x32xf32>
    %7 = arith.truncf %4 : vector<8x32xf32> to vector<8x32xbf16>
    %8 = arith.truncf %6 : vector<8x32xf32> to vector<8x32xbf16>
    %c0_6 = arith.constant 0 : index
    %c0_7 = arith.constant 0 : index
    %c0_8 = arith.constant 0 : index
    %9 = vector.load %arg4[%c0_6, %c0_7, %c0_8] : memref<1x32x8xbf16, #tpu.memory_space<vmem>>, vector<1x32x8xbf16>
    %10 = vector.shape_cast %9 : vector<1x32x8xbf16> to vector<32x8xbf16>
    %cst = arith.constant dense<0.000000e+00> : vector<8x8xf32>
    %11 = tpu.matmul %7, %10, %cst {dimension_numbers = #tpu.dot_dimension_numbers<[1], [0], [0], [1], [0, 0, 1, 1], [], []>} : vector<8x32xbf16>, vector<32x8xbf16>, vector<8x8xf32> -> vector<8x8xf32>
    %c0_9 = arith.constant 0 : index
    %c0_10 = arith.constant 0 : index
    %c0_11 = arith.constant 0 : index
    %12 = vector.load %arg5[%c0_9, %c0_10, %c0_11] : memref<1x1x8xf32, #tpu.memory_space<vmem>>, vector<1x1x8xf32>
    %13 = vector.shape_cast %12 : vector<1x1x8xf32> to vector<1x8xf32>
    %14 = vector.broadcast %13 : vector<1x8xf32> to vector<8x8xf32>
    %15 = arith.addf %11, %14 : vector<8x8xf32>
    %c0_12 = arith.constant 0 : index
    %c0_13 = arith.constant 0 : index
    %c0_14 = arith.constant 0 : index
    %16 = vector.load %arg6[%c0_12, %c0_13, %c0_14] : memref<1x32x16xbf16, #tpu.memory_space<vmem>>, vector<1x32x16xbf16>
    %17 = vector.shape_cast %16 : vector<1x32x16xbf16> to vector<32x16xbf16>
    %cst_15 = arith.constant dense<0.000000e+00> : vector<8x16xf32>
    %18 = tpu.matmul %8, %17, %cst_15 {dimension_numbers = #tpu.dot_dimension_numbers<[1], [0], [0], [1], [0, 0, 1, 1], [], []>} : vector<8x32xbf16>, vector<32x16xbf16>, vector<8x16xf32> -> vector<8x16xf32>
    %c0_16 = arith.constant 0 : index
    %c0_17 = arith.constant 0 : index
    %c0_18 = arith.constant 0 : index
    %19 = vector.load %arg7[%c0_16, %c0_17, %c0_18] : memref<1x1x16xf32, #tpu.memory_space<vmem>>, vector<1x1x16xf32>
    %20 = vector.shape_cast %19 : vector<1x1x16xf32> to vector<1x16xf32>
    %21 = vector.broadcast %20 : vector<1x16xf32> to vector<8x16xf32>
    %22 = arith.addf %18, %21 : vector<8x16xf32>
    %23 = vector.extract_strided_slice %22 {offsets = [0, 0], sizes = [8, 8], strides = [1, 1]} : vector<8x16xf32> to vector<8x8xf32>
    %24 = vector.extract_strided_slice %22 {offsets = [0, 8], sizes = [8, 8], strides = [1, 1]} : vector<8x16xf32> to vector<8x8xf32>
    %25 = arith.truncf %15 : vector<8x8xf32> to vector<8x8xbf16>
    %26 = arith.truncf %23 : vector<8x8xf32> to vector<8x8xbf16>
    %cst_19 = arith.constant dense<0.000000e+00> : vector<8x8xf32>
    %27 = tpu.matmul %25, %26, %cst_19 {dimension_numbers = #tpu.dot_dimension_numbers<[1], [1], [0], [0], [0, 0, 1, 0], [], []>} : vector<8x8xbf16>, vector<8x8xbf16>, vector<8x8xf32> -> vector<8x8xf32>
    %cst_20 = arith.constant 0.353553385 : f32
    %28 = vector.broadcast %cst_20 : f32 to vector<8x8xf32>
    %29 = arith.mulf %27, %28 : vector<8x8xf32>
    %cst_21 = arith.constant dense<0xFF800000> : vector<8xf32>
    %30 = vector.multi_reduction <maximumf>, %29, %cst_21 [1] : vector<8x8xf32> to vector<8xf32>
    %31 = vector.shape_cast %30 : vector<8xf32> to vector<8x1xf32>
    %32 = vector.broadcast %31 : vector<8x1xf32> to vector<8x8xf32>
    %33 = arith.subf %29, %32 : vector<8x8xf32>
    %34 = math.exp %33 : vector<8x8xf32>
    %cst_22 = arith.constant dense<0.000000e+00> : vector<8xf32>
    %35 = vector.multi_reduction <add>, %34, %cst_22 [1] : vector<8x8xf32> to vector<8xf32>
    %36 = vector.shape_cast %35 : vector<8xf32> to vector<8x1xf32>
    %37 = tpu.reciprocal %36 {approx = true} : vector<8x1xf32> -> vector<8x1xf32>
    %38 = vector.broadcast %37 : vector<8x1xf32> to vector<8x8xf32>
    %39 = arith.mulf %34, %38 : vector<8x8xf32>
    %40 = arith.truncf %39 : vector<8x8xf32> to vector<8x8xbf16>
    %41 = arith.truncf %24 : vector<8x8xf32> to vector<8x8xbf16>
    %cst_23 = arith.constant dense<0.000000e+00> : vector<8x8xf32>
    %42 = tpu.matmul %40, %41, %cst_23 {dimension_numbers = #tpu.dot_dimension_numbers<[1], [0], [0], [1], [0, 0, 1, 1], [], []>} : vector<8x8xbf16>, vector<8x8xbf16>, vector<8x8xf32> -> vector<8x8xf32>
    %c0_24 = arith.constant 0 : index
    %c0_25 = arith.constant 0 : index
    %43 = vector.load %arg17[%c0_24, %c0_25] : memref<8x32xf32, #tpu.memory_space<vmem>>, vector<8x32xf32>
    %44 = arith.truncf %42 : vector<8x8xf32> to vector<8x8xbf16>
    %c0_26 = arith.constant 0 : index
    %c0_27 = arith.constant 0 : index
    %c0_28 = arith.constant 0 : index
    %45 = vector.load %arg8[%c0_26, %c0_27, %c0_28] : memref<1x8x32xbf16, #tpu.memory_space<vmem>>, vector<1x8x32xbf16>
    %46 = vector.shape_cast %45 : vector<1x8x32xbf16> to vector<8x32xbf16>
    %cst_29 = arith.constant dense<0.000000e+00> : vector<8x32xf32>
    %47 = tpu.matmul %44, %46, %cst_29 {dimension_numbers = #tpu.dot_dimension_numbers<[1], [0], [0], [1], [0, 0, 1, 1], [], []>} : vector<8x8xbf16>, vector<8x32xbf16>, vector<8x32xf32> -> vector<8x32xf32>
    %48 = arith.addf %43, %47 : vector<8x32xf32>
    %c0_30 = arith.constant 0 : index
    %c0_31 = arith.constant 0 : index
    %49 = vector.load %arg17[%c0_30, %c0_31] : memref<8x32xf32, #tpu.memory_space<vmem>>, vector<8x32xf32>
    tpu.vector_store %arg17[%c0_30, %c0_31], %48 {strides = array<i32>} : memref<8x32xf32, #tpu.memory_space<vmem>>, vector<8x32xf32>,
    %c3_i32 = arith.constant 3 : i32
    %50 = arith.cmpi eq, %arg1, %c3_i32 : i32
    %51 = arith.extui %50 : i1 to i32
    %c0_i32_32 = arith.constant 0 : i32
    %52 = arith.cmpi ne, %51, %c0_i32_32 : i32
    scf.if %52 {
      %c0_33 = arith.constant 0 : index
      %c0_34 = arith.constant 0 : index
      %53 = vector.load %arg13[%c0_33, %c0_34] : memref<3x32xf32, #tpu.memory_space<vmem>>, vector<3x32xf32>
      %c0_35 = arith.constant 0 : index
      %c0_36 = arith.constant 0 : index
      %54 = vector.load %arg14[%c0_35, %c0_36] : memref<3x32xf32, #tpu.memory_space<vmem>>, vector<3x32xf32>
      %c0_37 = arith.constant 0 : index
      %c0_38 = arith.constant 0 : index
      %55 = vector.load %arg15[%c0_37, %c0_38] : memref<3x32xf32, #tpu.memory_space<vmem>>, vector<3x32xf32>
      %c0_39 = arith.constant 0 : index
      %c0_40 = arith.constant 0 : index
      %56 = vector.load %arg17[%c0_39, %c0_40] : memref<8x32xf32, #tpu.memory_space<vmem>>, vector<8x32xf32>
      %57 = vector.extract_strided_slice %53 {offsets = [0, 0], sizes = [1, 32], strides = [1, 1]} : vector<3x32xf32> to vector<1x32xf32>
      %58 = vector.broadcast %57 : vector<1x32xf32> to vector<8x32xf32>
      %59 = arith.addf %56, %58 : vector<8x32xf32>
      %60 = arith.addf %4, %59 : vector<8x32xf32>
      %61 = vector.extract_strided_slice %54 {offsets = [0, 0], sizes = [1, 32], strides = [1, 1]} : vector<3x32xf32> to vector<1x32xf32>
      %62 = vector.extract_strided_slice %55 {offsets = [0, 0], sizes = [1, 32], strides = [1, 1]} : vector<3x32xf32> to vector<1x32xf32>
      %cst_41 = arith.constant dense<0.000000e+00> : vector<8xf32>
      %63 = vector.multi_reduction <add>, %60, %cst_41 [1] : vector<8x32xf32> to vector<8xf32>
      %64 = vector.shape_cast %63 : vector<8xf32> to vector<8x1xf32>
      %cst_42 = arith.constant 3.200000e+01 : f32
      %65 = vector.broadcast %cst_42 : f32 to vector<8x1xf32>
      %66 = arith.divf %64, %65 : vector<8x1xf32>
      %67 = vector.broadcast %66 : vector<8x1xf32> to vector<8x32xf32>
      %68 = arith.subf %60, %67 : vector<8x32xf32>
      %69 = arith.mulf %68, %68 : vector<8x32xf32>
      %cst_43 = arith.constant dense<0.000000e+00> : vector<8xf32>
      %70 = vector.multi_reduction <add>, %69, %cst_43 [1] : vector<8x32xf32> to vector<8xf32>
      %71 = vector.shape_cast %70 : vector<8xf32> to vector<8x1xf32>
      %cst_44 = arith.constant 3.200000e+01 : f32
      %72 = vector.broadcast %cst_44 : f32 to vector<8x1xf32>
      %73 = arith.divf %71, %72 : vector<8x1xf32>
      %cst_45 = arith.constant 9.99999997E-7 : f32
      %74 = vector.broadcast %cst_45 : f32 to vector<8x1xf32>
      %75 = arith.addf %73, %74 : vector<8x1xf32>
      %76 = math.rsqrt %75 : vector<8x1xf32>
      %77 = vector.broadcast %76 : vector<8x1xf32> to vector<8x32xf32>
      %78 = arith.mulf %68, %77 : vector<8x32xf32>
      %79 = vector.broadcast %61 : vector<1x32xf32> to vector<8x32xf32>
      %80 = arith.mulf %78, %79 : vector<8x32xf32>
      %81 = vector.broadcast %62 : vector<1x32xf32> to vector<8x32xf32>
      %82 = arith.addf %80, %81 : vector<8x32xf32>
      %83 = arith.truncf %82 : vector<8x32xf32> to vector<8x32xbf16>
      %c0_46 = arith.constant 0 : index
      %c0_47 = arith.constant 0 : index
      %84 = vector.load %arg9[%c0_46, %c0_47] : memref<32x64xbf16, #tpu.memory_space<vmem>>, vector<32x64xbf16>
      %cst_48 = arith.constant dense<0.000000e+00> : vector<8x64xf32>
      %85 = tpu.matmul %83, %84, %cst_48 {dimension_numbers = #tpu.dot_dimension_numbers<[1], [0], [0], [1], [0, 0, 1, 1], [], []>} : vector<8x32xbf16>, vector<32x64xbf16>, vector<8x64xf32> -> vector<8x64xf32>
      %c0_49 = arith.constant 0 : index
      %c0_50 = arith.constant 0 : index
      %86 = vector.load %arg10[%c0_49, %c0_50] : memref<1x64xf32, #tpu.memory_space<vmem>>, vector<1x64xf32>
      %87 = vector.broadcast %86 : vector<1x64xf32> to vector<8x64xf32>
      %88 = arith.addf %85, %87 : vector<8x64xf32>
      %cst_51 = arith.constant 0.000000e+00 : f32
      %89 = vector.broadcast %cst_51 : f32 to vector<8x64xf32>
      %90 = arith.maximumf %88, %89 : vector<8x64xf32>
      %91 = arith.truncf %90 : vector<8x64xf32> to vector<8x64xbf16>
      %c0_52 = arith.constant 0 : index
      %c0_53 = arith.constant 0 : index
      %92 = vector.load %arg11[%c0_52, %c0_53] : memref<64x32xbf16, #tpu.memory_space<vmem>>, vector<64x32xbf16>
      %cst_54 = arith.constant dense<0.000000e+00> : vector<8x32xf32>
      %93 = tpu.matmul %91, %92, %cst_54 {dimension_numbers = #tpu.dot_dimension_numbers<[1], [0], [0], [1], [0, 0, 1, 1], [], []>} : vector<8x64xbf16>, vector<64x32xbf16>, vector<8x32xf32> -> vector<8x32xf32>
      %94 = vector.extract_strided_slice %53 {offsets = [1, 0], sizes = [1, 32], strides = [1, 1]} : vector<3x32xf32> to vector<1x32xf32>
      %95 = vector.broadcast %94 : vector<1x32xf32> to vector<8x32xf32>
      %96 = arith.addf %93, %95 : vector<8x32xf32>
      %97 = arith.addf %82, %96 : vector<8x32xf32>
      %98 = vector.extract_strided_slice %54 {offsets = [1, 0], sizes = [1, 32], strides = [1, 1]} : vector<3x32xf32> to vector<1x32xf32>
      %99 = vector.extract_strided_slice %55 {offsets = [1, 0], sizes = [1, 32], strides = [1, 1]} : vector<3x32xf32> to vector<1x32xf32>
      %cst_55 = arith.constant dense<0.000000e+00> : vector<8xf32>
      %100 = vector.multi_reduction <add>, %97, %cst_55 [1] : vector<8x32xf32> to vector<8xf32>
      %101 = vector.shape_cast %100 : vector<8xf32> to vector<8x1xf32>
      %cst_56 = arith.constant 3.200000e+01 : f32
      %102 = vector.broadcast %cst_56 : f32 to vector<8x1xf32>
      %103 = arith.divf %101, %102 : vector<8x1xf32>
      %104 = vector.broadcast %103 : vector<8x1xf32> to vector<8x32xf32>
      %105 = arith.subf %97, %104 : vector<8x32xf32>
      %106 = arith.mulf %105, %105 : vector<8x32xf32>
      %cst_57 = arith.constant dense<0.000000e+00> : vector<8xf32>
      %107 = vector.multi_reduction <add>, %106, %cst_57 [1] : vector<8x32xf32> to vector<8xf32>
      %108 = vector.shape_cast %107 : vector<8xf32> to vector<8x1xf32>
      %cst_58 = arith.constant 3.200000e+01 : f32
      %109 = vector.broadcast %cst_58 : f32 to vector<8x1xf32>
      %110 = arith.divf %108, %109 : vector<8x1xf32>
      %cst_59 = arith.constant 9.99999997E-7 : f32
      %111 = vector.broadcast %cst_59 : f32 to vector<8x1xf32>
      %112 = arith.addf %110, %111 : vector<8x1xf32>
      %113 = math.rsqrt %112 : vector<8x1xf32>
      %114 = vector.broadcast %113 : vector<8x1xf32> to vector<8x32xf32>
      %115 = arith.mulf %105, %114 : vector<8x32xf32>
      %116 = vector.broadcast %98 : vector<1x32xf32> to vector<8x32xf32>
      %117 = arith.mulf %115, %116 : vector<8x32xf32>
      %118 = vector.broadcast %99 : vector<1x32xf32> to vector<8x32xf32>
      %119 = arith.addf %117, %118 : vector<8x32xf32>
      %120 = arith.truncf %119 : vector<8x32xf32> to vector<8x32xbf16>
      %c0_60 = arith.constant 0 : index
      %c0_61 = arith.constant 0 : index
      %121 = vector.load %arg12[%c0_60, %c0_61] : memref<32x32xbf16, #tpu.memory_space<vmem>>, vector<32x32xbf16>
      %cst_62 = arith.constant dense<0.000000e+00> : vector<8x32xf32>
      %122 = tpu.matmul %120, %121, %cst_62 {dimension_numbers = #tpu.dot_dimension_numbers<[1], [0], [0], [1], [0, 0, 1, 1], [], []>} : vector<8x32xbf16>, vector<32x32xbf16>, vector<8x32xf32> -> vector<8x32xf32>
      %123 = vector.extract_strided_slice %53 {offsets = [2, 0], sizes = [1, 32], strides = [1, 1]} : vector<3x32xf32> to vector<1x32xf32>
      %124 = vector.broadcast %123 : vector<1x32xf32> to vector<8x32xf32>
      %125 = arith.addf %122, %124 : vector<8x32xf32>
      %126 = vector.extract_strided_slice %54 {offsets = [2, 0], sizes = [1, 32], strides = [1, 1]} : vector<3x32xf32> to vector<1x32xf32>
      %127 = vector.extract_strided_slice %55 {offsets = [2, 0], sizes = [1, 32], strides = [1, 1]} : vector<3x32xf32> to vector<1x32xf32>
      %cst_63 = arith.constant dense<0.000000e+00> : vector<8xf32>
      %128 = vector.multi_reduction <add>, %125, %cst_63 [1] : vector<8x32xf32> to vector<8xf32>
      %129 = vector.shape_cast %128 : vector<8xf32> to vector<8x1xf32>
      %cst_64 = arith.constant 3.200000e+01 : f32
      %130 = vector.broadcast %cst_64 : f32 to vector<8x1xf32>
      %131 = arith.divf %129, %130 : vector<8x1xf32>
      %132 = vector.broadcast %131 : vector<8x1xf32> to vector<8x32xf32>
      %133 = arith.subf %125, %132 : vector<8x32xf32>
      %134 = arith.mulf %133, %133 : vector<8x32xf32>
      %cst_65 = arith.constant dense<0.000000e+00> : vector<8xf32>
      %135 = vector.multi_reduction <add>, %134, %cst_65 [1] : vector<8x32xf32> to vector<8xf32>
      %136 = vector.shape_cast %135 : vector<8xf32> to vector<8x1xf32>
      %cst_66 = arith.constant 3.200000e+01 : f32
      %137 = vector.broadcast %cst_66 : f32 to vector<8x1xf32>
      %138 = arith.divf %136, %137 : vector<8x1xf32>
      %cst_67 = arith.constant 9.99999997E-7 : f32
      %139 = vector.broadcast %cst_67 : f32 to vector<8x1xf32>
      %140 = arith.addf %138, %139 : vector<8x1xf32>
      %141 = math.rsqrt %140 : vector<8x1xf32>
      %142 = vector.broadcast %141 : vector<8x1xf32> to vector<8x32xf32>
      %143 = arith.mulf %133, %142 : vector<8x32xf32>
      %144 = vector.broadcast %126 : vector<1x32xf32> to vector<8x32xf32>
      %145 = arith.mulf %143, %144 : vector<8x32xf32>
      %146 = vector.broadcast %127 : vector<1x32xf32> to vector<8x32xf32>
      %147 = arith.addf %145, %146 : vector<8x32xf32>
      %c0_68 = arith.constant 0 : index
      %c0_69 = arith.constant 0 : index
      %c0_70 = arith.constant 0 : index
      %148 = vector.load %arg16[%c0_68, %c0_69, %c0_70] : memref<1x8x32xf32, #tpu.memory_space<vmem>>, vector<1x8x32xf32>
      %149 = vector.shape_cast %148 : vector<1x8x32xf32> to vector<8x32xf32>
      %150 = vector.shape_cast %147 : vector<8x32xf32> to vector<1x8x32xf32>
      tpu.vector_store %arg16[%c0_68, %c0_69, %c0_70], %150 {strides = array<i32>} : memref<1x8x32xf32, #tpu.memory_space<vmem>>, vector<1x8x32xf32>,
    } else {
    }
    return
  }
  func.func @transform_0(%arg0: i32, %arg1: i32) -> (i32, i32, i32) {
    %c0_i32 = arith.constant 0 : i32
    %c0_i32_0 = arith.constant 0 : i32
    %c0_i32_1 = arith.constant 0 : i32
    return %arg0, %c0_i32, %c0_i32_0 : i32, i32, i32
  }
  func.func @transform_1(%arg0: i32, %arg1: i32) -> (i32, i32, i32) {
    %c0_i32 = arith.constant 0 : i32
    %c0_i32_0 = arith.constant 0 : i32
    %c0_i32_1 = arith.constant 0 : i32
    return %arg0, %c0_i32, %c0_i32_0 : i32, i32, i32
  }
  func.func @transform_2(%arg0: i32, %arg1: i32) -> (i32, i32, i32) {
    %c0_i32 = arith.constant 0 : i32
    %c0_i32_0 = arith.constant 0 : i32
    %c0_i32_1 = arith.constant 0 : i32
    return %arg1, %c0_i32, %c0_i32_0 : i32, i32, i32
  }
  func.func @transform_3(%arg0: i32, %arg1: i32) -> (i32, i32, i32) {
    %c0_i32 = arith.constant 0 : i32
    %c0_i32_0 = arith.constant 0 : i32
    %c0_i32_1 = arith.constant 0 : i32
    return %arg1, %c0_i32, %c0_i32_0 : i32, i32, i32
  }
  func.func @transform_4(%arg0: i32, %arg1: i32) -> (i32, i32, i32) {
    %c0_i32 = arith.constant 0 : i32
    %c0_i32_0 = arith.constant 0 : i32
    %c0_i32_1 = arith.constant 0 : i32
    return %arg1, %c0_i32, %c0_i32_0 : i32, i32, i32
  }
  func.func @transform_5(%arg0: i32, %arg1: i32) -> (i32, i32, i32) {
    %c0_i32 = arith.constant 0 : i32
    %c0_i32_0 = arith.constant 0 : i32
    %c0_i32_1 = arith.constant 0 : i32
    return %arg1, %c0_i32, %c0_i32_0 : i32, i32, i32
  }
  func.func @transform_6(%arg0: i32, %arg1: i32) -> (i32, i32, i32) {
    %c0_i32 = arith.constant 0 : i32
    %c0_i32_0 = arith.constant 0 : i32
    %c0_i32_1 = arith.constant 0 : i32
    return %arg1, %c0_i32, %c0_i32_0 : i32, i32, i32
  }
  func.func @transform_7(%arg0: i32, %arg1: i32) -> (i32, i32) {
    %c0_i32 = arith.constant 0 : i32
    %c0_i32_0 = arith.constant 0 : i32
    %c0_i32_1 = arith.constant 0 : i32
    return %c0_i32, %c0_i32_0 : i32, i32
  }
  func.func @transform_8(%arg0: i32, %arg1: i32) -> (i32, i32) {
    %c0_i32 = arith.constant 0 : i32
    %c0_i32_0 = arith.constant 0 : i32
    %c0_i32_1 = arith.constant 0 : i32
    return %c0_i32, %c0_i32_0 : i32, i32
  }
  func.func @transform_9(%arg0: i32, %arg1: i32) -> (i32, i32) {
    %c0_i32 = arith.constant 0 : i32
    %c0_i32_0 = arith.constant 0 : i32
    %c0_i32_1 = arith.constant 0 : i32
    return %c0_i32, %c0_i32_0 : i32, i32
  }
  func.func @transform_10(%arg0: i32, %arg1: i32) -> (i32, i32) {
    %c0_i32 = arith.constant 0 : i32
    %c0_i32_0 = arith.constant 0 : i32
    %c0_i32_1 = arith.constant 0 : i32
    return %c0_i32, %c0_i32_0 : i32, i32
  }
  func.func @transform_11(%arg0: i32, %arg1: i32) -> (i32, i32) {
    %c0_i32 = arith.constant 0 : i32
    %c0_i32_0 = arith.constant 0 : i32
    %c0_i32_1 = arith.constant 0 : i32
    return %c0_i32, %c0_i32_0 : i32, i32
  }
  func.func @transform_12(%arg0: i32, %arg1: i32) -> (i32, i32) {
    %c0_i32 = arith.constant 0 : i32
    %c0_i32_0 = arith.constant 0 : i32
    %c0_i32_1 = arith.constant 0 : i32
    return %c0_i32, %c0_i32_0 : i32, i32
  }
  func.func @transform_13(%arg0: i32, %arg1: i32) -> (i32, i32) {
    %c0_i32 = arith.constant 0 : i32
    %c0_i32_0 = arith.constant 0 : i32
    %c0_i32_1 = arith.constant 0 : i32
    return %c0_i32, %c0_i32_0 : i32, i32
  }
  func.func @transform_14(%arg0: i32, %arg1: i32) -> (i32, i32, i32) {
    %c0_i32 = arith.constant 0 : i32
    %c0_i32_0 = arith.constant 0 : i32
    %c0_i32_1 = arith.constant 0 : i32
    return %arg0, %c0_i32, %c0_i32_0 : i32, i32, i32
  }
}

</mosaic_0001>

<llo_original>
// kernel: tpu_custom_call.1
$region0: #{tpu_custom_call.1}
  #allocation0 [shape = 'u32[]', space=smem, size = 0x4, offset = 0x4, fixed_abs, tag = 'smem constant byte address 0x4 - core index']
  #allocation1 [shape = 'u32[144,128]{1,0:T(1,128)}', space=vmem, size = 0x12000, scoped, tag = 'internal scratch']
  #allocation2 [shape = 'f32[8,32]{1,0:T(8,128)}', space=vmem, size = 0x1000, scoped, tag = 'scratch operand']
  %s0 = inlined_call_operand.vmem [shape: f32[2,8,32], index: 0, kind: input, shape index: {}]
  %s1 = inlined_call_operand.vmem [shape: f32[2,8,32], index: 1, kind: input, shape index: {}]
  %s2 = inlined_call_operand.vmem [shape: bf16[4,32,8], index: 2, kind: input, shape index: {}]
  %s3 = inlined_call_operand.vmem [shape: f32[4,1,8], index: 3, kind: input, shape index: {}]
  %s4 = inlined_call_operand.vmem [shape: bf16[4,32,16], index: 4, kind: input, shape index: {}]
  %s5 = inlined_call_operand.vmem [shape: f32[4,1,16], index: 5, kind: input, shape index: {}]
  %s6 = inlined_call_operand.vmem [shape: bf16[4,8,32], index: 6, kind: input, shape index: {}]
  %s7 = inlined_call_operand.vmem [shape: bf16[32,64], index: 7, kind: input, shape index: {}]
  %s8 = inlined_call_operand.vmem [shape: f32[1,64], index: 8, kind: input, shape index: {}]
  %s9 = inlined_call_operand.vmem [shape: bf16[64,32], index: 9, kind: input, shape index: {}]
  %s10 = inlined_call_operand.vmem [shape: bf16[32,32], index: 10, kind: input, shape index: {}]
  %s11 = inlined_call_operand.vmem [shape: f32[3,32], index: 11, kind: input, shape index: {}]
  %s12 = inlined_call_operand.vmem [shape: f32[3,32], index: 12, kind: input, shape index: {}]
  %s13 = inlined_call_operand.vmem [shape: f32[3,32], index: 13, kind: input, shape index: {}]
  %s14 = inlined_call_operand.hbm [shape: f32[2,8,32], index: 14, kind: output, shape index: {}]
  %s15 = sld [smem:[#allocation0]]
  $region97: #{tpu_custom_call.1} parent=0
    _
  %s17 = ssub.s32 1, %s15
  %s18 = scalar_select 0, %s17, %s15
  $region1: #{tpu_custom_call.1} parent=0
    #allocation3 [shape = 'u8[8192]{0}', space=vmem, size = 0x2000, scoped, tag = 'output window, operand 0']
    #allocation4 [shape = 's32[2]{0}', space=sflag, size = 0x8, scoped, tag = 'scoped memory for tpu_custom_call.1']
    %19 = vsyncpa [#allocation4], 0
    %s20 = scalar_lea.sflag [#allocation4], 1
    %21 = vsyncpa %s20, 0
    loop: start=0, step=1, limit=10
    $region2: #{tpu_custom_call.1} parent=1 // loop_pre_header
      _
    $region3: #{tpu_custom_call.1} parent=1 // loop_header
      %s23 = sphi 0, %s27
      %p24 = scmp.ge.s32.totalorder %s23, 10
      %s30 = sphi 0, %s42
      %s31 = sphi 0, %s38
      %s32 = sphi 0, %s30
      %s33 = sphi 0, %s31
      %s34 = sphi 0, %s32
      %s35 = sphi 0, %s33
      %s45 = sphi 0, %s47
      %s48 = sphi 0, %s45
      %s49 = sphi 0, %s48
      %s65 = sphi 0, %s49
      %s71 = sphi 0, %s73
      %s74 = sphi 0, %s71
      %s75 = sphi 0, %s74
      %s91 = sphi 0, %s75
      %s97 = sphi 0, %s99
      %s100 = sphi 0, %s97
      %s101 = sphi 0, %s100
      %s117 = sphi 0, %s101
      %s123 = sphi 0, %s125
      %s126 = sphi 0, %s123
      %s127 = sphi 0, %s126
      %s143 = sphi 0, %s127
      %s149 = sphi 0, %s151
      %s152 = sphi 0, %s149
      %s153 = sphi 0, %s152
      %s169 = sphi 0, %s153
      %s175 = sphi 0, %s177
      %s178 = sphi 0, %s175
      %s179 = sphi 0, %s178
      %s195 = sphi 0, %s179
      %s201 = sphi 0, %s203
      %s204 = sphi 0, %s201
      %s205 = sphi 0, %s204
      %s221 = sphi 0, %s205
      %s225 = sphi 0, %s225
      %s227 = sphi 0, %s225
      %s228 = sphi 0, %s227
      %s242 = sphi 0, %s228
      %s246 = sphi 0, %s246
      %s248 = sphi 0, %s246
      %s249 = sphi 0, %s248
      %s263 = sphi 0, %s249
      %s267 = sphi 0, %s267
      %s269 = sphi 0, %s267
      %s270 = sphi 0, %s269
      %s284 = sphi 0, %s270
      %s288 = sphi 0, %s288
      %s290 = sphi 0, %s288
      %s291 = sphi 0, %s290
      %s305 = sphi 0, %s291
      %s309 = sphi 0, %s309
      %s311 = sphi 0, %s309
      %s312 = sphi 0, %s311
      %s326 = sphi 0, %s312
      %s330 = sphi 0, %s330
      %s332 = sphi 0, %s330
      %s333 = sphi 0, %s332
      %s347 = sphi 0, %s333
      %s351 = sphi 0, %s351
      %s353 = sphi 0, %s351
      %s354 = sphi 0, %s353
      %s368 = sphi 0, %s354
      %s374 = sphi 0, %s376
      %s377 = sphi 0, %s374
      %s378 = sphi 0, %s377
      %s394 = sphi 0, %s378
    $region4: #{tpu_custom_call.1} parent=1 // loop_header_branch
      %26 = sbr.rel (%p24) target = $region8
    $region5: #{tpu_custom_call.1} parent=1 // loop_body
      %s28 = ssub.s32 %s23, 1
      %s29 = ssub.s32 %s23, 2
      %s36 = sadd.s32 1, %s31
      %p37 = scmp.ge.s32.totalorder %s36, 4
      %s38 = scalar_select %p37, 0, %s36
      %s39 = sadd.s32 1, %s30
      %s40 = scalar_select %p37, %s39, %s30
      %p41 = scmp.ge.s32.totalorder %s40, 2
      %s42 = scalar_select %p41, 0, %s40
      %s43 = ssub.s32 %s30, %s42
      %p44 = scmp.eq.s32.totalorder %s43, 0
      %s46 = sadd.s32 %s45, 1
      %s47 = scalar_select %p44, %s45, %s46
      %p50 = pneg %p44
      %p51 = scmp.eq.s32.totalorder %s23, 7
      %p52 = por %p50, %p51
      %p53 = scmp.ne.s32.totalorder %s45, %s48
      %p54 = scmp.eq.s32.totalorder %s23, 0
      %p55 = por %p53, %p54
      %p56 = scmp.ne.s32.totalorder %s45, %s48
      %p57 = scmp.eq.s32.totalorder %s28, 7
      %p58 = por %p56, %p57
      %p59 = scmp.ne.s32.totalorder %s48, %s49
      %p60 = scmp.eq.s32.totalorder %s28, 0
      %p61 = por %p59, %p60
      %p62 = scmp.ne.s32.totalorder %s48, %s49
      %p63 = scmp.eq.s32.totalorder %s29, 7
      %p64 = por %p62, %p63
      %p66 = scmp.ne.s32.totalorder %s49, %s65
      %p67 = scmp.eq.s32.totalorder %s29, 0
      %p68 = por %p66, %p67
      %s69 = ssub.s32 %s30, %s42
      %p70 = scmp.eq.s32.totalorder %s69, 0
      %s72 = sadd.s32 %s71, 1
      %s73 = scalar_select %p70, %s71, %s72
      %p76 = pneg %p70
      %p77 = scmp.eq.s32.totalorder %s23, 7
      %p78 = por %p76, %p77
      %p79 = scmp.ne.s32.totalorder %s71, %s74
      %p80 = scmp.eq.s32.totalorder %s23, 0
      %p81 = por %p79, %p80
      %p82 = scmp.ne.s32.totalorder %s71, %s74
      %p83 = scmp.eq.s32.totalorder %s28, 7
      %p84 = por %p82, %p83
      %p85 = scmp.ne.s32.totalorder %s74, %s75
      %p86 = scmp.eq.s32.totalorder %s28, 0
      %p87 = por %p85, %p86
      %p88 = scmp.ne.s32.totalorder %s74, %s75
      %p89 = scmp.eq.s32.totalorder %s29, 7
      %p90 = por %p88, %p89
      %p92 = scmp.ne.s32.totalorder %s75, %s91
      %p93 = scmp.eq.s32.totalorder %s29, 0
      %p94 = por %p92, %p93
      %s95 = ssub.s32 %s31, %s38
      %p96 = scmp.eq.s32.totalorder %s95, 0
      %s98 = sadd.s32 %s97, 1
      %s99 = scalar_select %p96, %s97, %s98
      %p102 = pneg %p96
      %p103 = scmp.eq.s32.totalorder %s23, 7
      %p104 = por %p102, %p103
      %p105 = scmp.ne.s32.totalorder %s97, %s100
      %p106 = scmp.eq.s32.totalorder %s23, 0
      %p107 = por %p105, %p106
      %p108 = scmp.ne.s32.totalorder %s97, %s100
      %p109 = scmp.eq.s32.totalorder %s28, 7
      %p110 = por %p108, %p109
      %p111 = scmp.ne.s32.totalorder %s100, %s101
      %p112 = scmp.eq.s32.totalorder %s28, 0
      %p113 = por %p111, %p112
      %p114 = scmp.ne.s32.totalorder %s100, %s101
      %p115 = scmp.eq.s32.totalorder %s29, 7
      %p116 = por %p114, %p115
      %p118 = scmp.ne.s32.totalorder %s101, %s117
      %p119 = scmp.eq.s32.totalorder %s29, 0
      %p120 = por %p118, %p119
      %s121 = ssub.s32 %s31, %s38
      %p122 = scmp.eq.s32.totalorder %s121, 0
      %s124 = sadd.s32 %s123, 1
      %s125 = scalar_select %p122, %s123, %s124
      %p128 = pneg %p122
      %p129 = scmp.eq.s32.totalorder %s23, 7
      %p130 = por %p128, %p129
      %p131 = scmp.ne.s32.totalorder %s123, %s126
      %p132 = scmp.eq.s32.totalorder %s23, 0
      %p133 = por %p131, %p132
      %p134 = scmp.ne.s32.totalorder %s123, %s126
      %p135 = scmp.eq.s32.totalorder %s28, 7
      %p136 = por %p134, %p135
      %p137 = scmp.ne.s32.totalorder %s126, %s127
      %p138 = scmp.eq.s32.totalorder %s28, 0
      %p139 = por %p137, %p138
      %p140 = scmp.ne.s32.totalorder %s126, %s127
      %p141 = scmp.eq.s32.totalorder %s29, 7
      %p142 = por %p140, %p141
      %p144 = scmp.ne.s32.totalorder %s127, %s143
      %p145 = scmp.eq.s32.totalorder %s29, 0
      %p146 = por %p144, %p145
      %s147 = ssub.s32 %s31, %s38
      %p148 = scmp.eq.s32.totalorder %s147, 0
      %s150 = sadd.s32 %s149, 1
      %s151 = scalar_select %p148, %s149, %s150
      %p154 = pneg %p148
      %p155 = scmp.eq.s32.totalorder %s23, 7
      %p156 = por %p154, %p155
      %p157 = scmp.ne.s32.totalorder %s149, %s152
      %p158 = scmp.eq.s32.totalorder %s23, 0
      %p159 = por %p157, %p158
      %p160 = scmp.ne.s32.totalorder %s149, %s152
      %p161 = scmp.eq.s32.totalorder %s28, 7
      %p162 = por %p160, %p161
      %p163 = scmp.ne.s32.totalorder %s152, %s153
      %p164 = scmp.eq.s32.totalorder %s28, 0
      %p165 = por %p163, %p164
      %p166 = scmp.ne.s32.totalorder %s152, %s153
      %p167 = scmp.eq.s32.totalorder %s29, 7
      %p168 = por %p166, %p167
      %p170 = scmp.ne.s32.totalorder %s153, %s169
      %p171 = scmp.eq.s32.totalorder %s29, 0
      %p172 = por %p170, %p171
      %s173 = ssub.s32 %s31, %s38
      %p174 = scmp.eq.s32.totalorder %s173, 0
      %s176 = sadd.s32 %s175, 1
      %s177 = scalar_select %p174, %s175, %s176
      %p180 = pneg %p174
      %p181 = scmp.eq.s32.totalorder %s23, 7
      %p182 = por %p180, %p181
      %p183 = scmp.ne.s32.totalorder %s175, %s178
      %p184 = scmp.eq.s32.totalorder %s23, 0
      %p185 = por %p183, %p184
      %p186 = scmp.ne.s32.totalorder %s175, %s178
      %p187 = scmp.eq.s32.totalorder %s28, 7
      %p188 = por %p186, %p187
      %p189 = scmp.ne.s32.totalorder %s178, %s179
      %p190 = scmp.eq.s32.totalorder %s28, 0
      %p191 = por %p189, %p190
      %p192 = scmp.ne.s32.totalorder %s178, %s179
      %p193 = scmp.eq.s32.totalorder %s29, 7
      %p194 = por %p192, %p193
      %p196 = scmp.ne.s32.totalorder %s179, %s195
      %p197 = scmp.eq.s32.totalorder %s29, 0
      %p198 = por %p196, %p197
      %s199 = ssub.s32 %s31, %s38
      %p200 = scmp.eq.s32.totalorder %s199, 0
      %s202 = sadd.s32 %s201, 1
      %s203 = scalar_select %p200, %s201, %s202
      %p206 = pneg %p200
      %p207 = scmp.eq.s32.totalorder %s23, 7
      %p208 = por %p206, %p207
      %p209 = scmp.ne.s32.totalorder %s201, %s204
      %p210 = scmp.eq.s32.totalorder %s23, 0
      %p211 = por %p209, %p210
      %p212 = scmp.ne.s32.totalorder %s201, %s204
      %p213 = scmp.eq.s32.totalorder %s28, 7
      %p214 = por %p212, %p213
      %p215 = scmp.ne.s32.totalorder %s204, %s205
      %p216 = scmp.eq.s32.totalorder %s28, 0
      %p217 = por %p215, %p216
      %p218 = scmp.ne.s32.totalorder %s204, %s205
      %p219 = scmp.eq.s32.totalorder %s29, 7
      %p220 = por %p218, %p219
      %p222 = scmp.ne.s32.totalorder %s205, %s221
      %p223 = scmp.eq.s32.totalorder %s29, 0
      %p224 = por %p222, %p223
      %s226 = sadd.s32 %s225, 1
      %p229 = scmp.eq.s32.totalorder %s23, 7
      %p230 = scmp.ne.s32.totalorder %s225, %s227
      %p231 = scmp.eq.s32.totalorder %s23, 0
      %p232 = por %p230, %p231
      %p233 = scmp.ne.s32.totalorder %s225, %s227
      %p234 = scmp.eq.s32.totalorder %s28, 7
      %p235 = por %p233, %p234
      %p236 = scmp.ne.s32.totalorder %s227, %s228
      %p237 = scmp.eq.s32.totalorder %s28, 0
      %p238 = por %p236, %p237
      %p239 = scmp.ne.s32.totalorder %s227, %s228
      %p240 = scmp.eq.s32.totalorder %s29, 7
      %p241 = por %p239, %p240
      %p243 = scmp.ne.s32.totalorder %s228, %s242
      %p244 = scmp.eq.s32.totalorder %s29, 0
      %p245 = por %p243, %p244
      %s247 = sadd.s32 %s246, 1
      %p250 = scmp.eq.s32.totalorder %s23, 7
      %p251 = scmp.ne.s32.totalorder %s246, %s248
      %p252 = scmp.eq.s32.totalorder %s23, 0
      %p253 = por %p251, %p252
      %p254 = scmp.ne.s32.totalorder %s246, %s248
      %p255 = scmp.eq.s32.totalorder %s28, 7
      %p256 = por %p254, %p255
      %p257 = scmp.ne.s32.totalorder %s248, %s249
      %p258 = scmp.eq.s32.totalorder %s28, 0
      %p259 = por %p257, %p258
      %p260 = scmp.ne.s32.totalorder %s248, %s249
      %p261 = scmp.eq.s32.totalorder %s29, 7
      %p262 = por %p260, %p261
      %p264 = scmp.ne.s32.totalorder %s249, %s263
      %p265 = scmp.eq.s32.totalorder %s29, 0
      %p266 = por %p264, %p265
      %s268 = sadd.s32 %s267, 1
      %p271 = scmp.eq.s32.totalorder %s23, 7
      %p272 = scmp.ne.s32.totalorder %s267, %s269
      %p273 = scmp.eq.s32.totalorder %s23, 0
      %p274 = por %p272, %p273
      %p275 = scmp.ne.s32.totalorder %s267, %s269
      %p276 = scmp.eq.s32.totalorder %s28, 7
      %p277 = por %p275, %p276
      %p278 = scmp.ne.s32.totalorder %s269, %s270
      %p279 = scmp.eq.s32.totalorder %s28, 0
      %p280 = por %p278, %p279
      %p281 = scmp.ne.s32.totalorder %s269, %s270
      %p282 = scmp.eq.s32.totalorder %s29, 7
      %p283 = por %p281, %p282
      %p285 = scmp.ne.s32.totalorder %s270, %s284
      %p286 = scmp.eq.s32.totalorder %s29, 0
      %p287 = por %p285, %p286
      %s289 = sadd.s32 %s288, 1
      %p292 = scmp.eq.s32.totalorder %s23, 7
      %p293 = scmp.ne.s32.totalorder %s288, %s290
      %p294 = scmp.eq.s32.totalorder %s23, 0
      %p295 = por %p293, %p294
      %p296 = scmp.ne.s32.totalorder %s288, %s290
      %p297 = scmp.eq.s32.totalorder %s28, 7
      %p298 = por %p296, %p297
      %p299 = scmp.ne.s32.totalorder %s290, %s291
      %p300 = scmp.eq.s32.totalorder %s28, 0
      %p301 = por %p299, %p300
      %p302 = scmp.ne.s32.totalorder %s290, %s291
      %p303 = scmp.eq.s32.totalorder %s29, 7
      %p304 = por %p302, %p303
      %p306 = scmp.ne.s32.totalorder %s291, %s305
      %p307 = scmp.eq.s32.totalorder %s29, 0
      %p308 = por %p306, %p307
      %s310 = sadd.s32 %s309, 1
      %p313 = scmp.eq.s32.totalorder %s23, 7
      %p314 = scmp.ne.s32.totalorder %s309, %s311
      %p315 = scmp.eq.s32.totalorder %s23, 0
      %p316 = por %p314, %p315
      %p317 = scmp.ne.s32.totalorder %s309, %s311
      %p318 = scmp.eq.s32.totalorder %s28, 7
      %p319 = por %p317, %p318
      %p320 = scmp.ne.s32.totalorder %s311, %s312
      %p321 = scmp.eq.s32.totalorder %s28, 0
      %p322 = por %p320, %p321
      %p323 = scmp.ne.s32.totalorder %s311, %s312
      %p324 = scmp.eq.s32.totalorder %s29, 7
      %p325 = por %p323, %p324
      %p327 = scmp.ne.s32.totalorder %s312, %s326
      %p328 = scmp.eq.s32.totalorder %s29, 0
      %p329 = por %p327, %p328
      %s331 = sadd.s32 %s330, 1
      %p334 = scmp.eq.s32.totalorder %s23, 7
      %p335 = scmp.ne.s32.totalorder %s330, %s332
      %p336 = scmp.eq.s32.totalorder %s23, 0
      %p337 = por %p335, %p336
      %p338 = scmp.ne.s32.totalorder %s330, %s332
      %p339 = scmp.eq.s32.totalorder %s28, 7
      %p340 = por %p338, %p339
      %p341 = scmp.ne.s32.totalorder %s332, %s333
      %p342 = scmp.eq.s32.totalorder %s28, 0
      %p343 = por %p341, %p342
      %p344 = scmp.ne.s32.totalorder %s332, %s333
      %p345 = scmp.eq.s32.totalorder %s29, 7
      %p346 = por %p344, %p345
      %p348 = scmp.ne.s32.totalorder %s333, %s347
      %p349 = scmp.eq.s32.totalorder %s29, 0
      %p350 = por %p348, %p349
      %s352 = sadd.s32 %s351, 1
      %p355 = scmp.eq.s32.totalorder %s23, 7
      %p356 = scmp.ne.s32.totalorder %s351, %s353
      %p357 = scmp.eq.s32.totalorder %s23, 0
      %p358 = por %p356, %p357
      %p359 = scmp.ne.s32.totalorder %s351, %s353
      %p360 = scmp.eq.s32.totalorder %s28, 7
      %p361 = por %p359, %p360
      %p362 = scmp.ne.s32.totalorder %s353, %s354
      %p363 = scmp.eq.s32.totalorder %s28, 0
      %p364 = por %p362, %p363
      %p365 = scmp.ne.s32.totalorder %s353, %s354
      %p366 = scmp.eq.s32.totalorder %s29, 7
      %p367 = por %p365, %p366
      %p369 = scmp.ne.s32.totalorder %s354, %s368
      %p370 = scmp.eq.s32.totalorder %s29, 0
      %p371 = por %p369, %p370
      %s372 = ssub.s32 %s30, %s42
      %p373 = scmp.eq.s32.totalorder %s372, 0
      %s375 = sadd.s32 %s374, 1
      %s376 = scalar_select %p373, %s374, %s375
      %p379 = pneg %p373
      %p380 = scmp.eq.s32.totalorder %s23, 7
      %p381 = por %p379, %p380
      %p382 = scmp.ne.s32.totalorder %s374, %s377
      %p383 = scmp.eq.s32.totalorder %s23, 0
      %p384 = por %p382, %p383
      %p385 = scmp.ne.s32.totalorder %s374, %s377
      %p386 = scmp.eq.s32.totalorder %s28, 7
      %p387 = por %p385, %p386
      %p388 = scmp.ne.s32.totalorder %s377, %s378
      %p389 = scmp.eq.s32.totalorder %s28, 0
      %p390 = por %p388, %p389
      %p391 = scmp.ne.s32.totalorder %s377, %s378
      %p392 = scmp.eq.s32.totalorder %s29, 7
      %p393 = por %p391, %p392
      %p395 = scmp.ne.s32.totalorder %s378, %s394
      %p396 = scmp.eq.s32.totalorder %s29, 0
      %p397 = por %p395, %p396
      %p398 = scmp.le.s32.totalorder 1, %s23
      %p399 = scmp.lt.s32.totalorder %s23, 9
      %p400 = pnand %p398, %p399
      %p401 = pneg %p400
      // Predicated region
      $region9: #{tpu_custom_call.1} parent=5 // pred_check
        _
      $region10: #{tpu_custom_call.1} parent=5 // pred_check_branch
        %403 = sbr.rel (%p400) target = $region12
      $region11: #{tpu_custom_call.1} parent=5 // pred_region
        %s404 = ssub.s32 %s23, 1
        // Predicated region
        $region13: #{tpu_custom_call.1} parent=11 // pred_check
          %p405 = pneg %p238
        $region14: #{tpu_custom_call.1} parent=11 // pred_check_branch
          %407 = sbr.rel (%p405) target = $region16
        $region15: #{tpu_custom_call.1} parent=11 // pred_region
          _
        $region16: #{tpu_custom_call.1} parent=11 // pred_fallthru
          _
        // Predicated region
        $region17: #{tpu_custom_call.1} parent=11 // pred_check
          %p408 = pneg %p259
        $region18: #{tpu_custom_call.1} parent=11 // pred_check_branch
          %410 = sbr.rel (%p408) target = $region20
        $region19: #{tpu_custom_call.1} parent=11 // pred_region
          _
        $region20: #{tpu_custom_call.1} parent=11 // pred_fallthru
          _
        // Predicated region
        $region21: #{tpu_custom_call.1} parent=11 // pred_check
          %p411 = pneg %p280
        $region22: #{tpu_custom_call.1} parent=11 // pred_check_branch
          %413 = sbr.rel (%p411) target = $region24
        $region23: #{tpu_custom_call.1} parent=11 // pred_region
          _
        $region24: #{tpu_custom_call.1} parent=11 // pred_fallthru
          _
        // Predicated region
        $region25: #{tpu_custom_call.1} parent=11 // pred_check
          %p414 = pneg %p301
        $region26: #{tpu_custom_call.1} parent=11 // pred_check_branch
          %416 = sbr.rel (%p414) target = $region28
        $region27: #{tpu_custom_call.1} parent=11 // pred_region
          _
        $region28: #{tpu_custom_call.1} parent=11 // pred_fallthru
          _
        // Predicated region
        $region29: #{tpu_custom_call.1} parent=11 // pred_check
          %p417 = pneg %p322
        $region30: #{tpu_custom_call.1} parent=11 // pred_check_branch
          %419 = sbr.rel (%p417) target = $region32
        $region31: #{tpu_custom_call.1} parent=11 // pred_region
          _
        $region32: #{tpu_custom_call.1} parent=11 // pred_fallthru
          _
        // Predicated region
        $region33: #{tpu_custom_call.1} parent=11 // pred_check
          %p420 = pneg %p343
        $region34: #{tpu_custom_call.1} parent=11 // pred_check_branch
          %422 = sbr.rel (%p420) target = $region36
        $region35: #{tpu_custom_call.1} parent=11 // pred_region
          _
        $region36: #{tpu_custom_call.1} parent=11 // pred_fallthru
          _
        // Predicated region
        $region37: #{tpu_custom_call.1} parent=11 // pred_check
          %p423 = pneg %p364
        $region38: #{tpu_custom_call.1} parent=11 // pred_check_branch
          %425 = sbr.rel (%p423) target = $region40
        $region39: #{tpu_custom_call.1} parent=11 // pred_region
          _
        $region40: #{tpu_custom_call.1} parent=11 // pred_fallthru
          _
      $region12: #{tpu_custom_call.1} parent=5 // pred_fallthru
        _
      %p426 = scmp.lt.s32.totalorder %s23, 8
      // Predicated region
      $region41: #{tpu_custom_call.1} parent=5 // pred_check
        %p427 = pneg %p426
      $region42: #{tpu_custom_call.1} parent=5 // pred_check_branch
        %429 = sbr.rel (%p427) target = $region44
      $region43: #{tpu_custom_call.1} parent=5 // pred_region
        // Predicated region
        $region45: #{tpu_custom_call.1} parent=43 // pred_check
          %p430 = pneg %p55
        $region46: #{tpu_custom_call.1} parent=43 // pred_check_branch
          %432 = sbr.rel (%p430) target = $region48
        $region47: #{tpu_custom_call.1} parent=43 // pred_region
          %p433 = scmp.lt.s32.totalorder %s30, 1
          %s434 = scalar_select %p433, %s30, 1
          %s435 = smul.addr %s434, 8
          %s436 = scalar_lea.vmem %s0, %s435
        $region48: #{tpu_custom_call.1} parent=43 // pred_fallthru
          _
        // Predicated region
        $region49: #{tpu_custom_call.1} parent=43 // pred_check
          %p437 = pneg %p81
        $region50: #{tpu_custom_call.1} parent=43 // pred_check_branch
          %439 = sbr.rel (%p437) target = $region52
        $region51: #{tpu_custom_call.1} parent=43 // pred_region
          %p440 = scmp.lt.s32.totalorder %s30, 1
          %s441 = scalar_select %p440, %s30, 1
          %s442 = smul.addr %s441, 8
          %s443 = scalar_lea.vmem %s1, %s442
        $region52: #{tpu_custom_call.1} parent=43 // pred_fallthru
          _
        // Predicated region
        $region53: #{tpu_custom_call.1} parent=43 // pred_check
          %p444 = pneg %p107
        $region54: #{tpu_custom_call.1} parent=43 // pred_check_branch
          %446 = sbr.rel (%p444) target = $region56
        $region55: #{tpu_custom_call.1} parent=43 // pred_region
          %p447 = scmp.lt.s32.totalorder %s31, 3
          %s448 = scalar_select %p447, %s31, 3
          %s449 = smul.addr %s448, 4
          %s450 = smul.addr %s449, 4
          %s451 = scalar_lea.vmem %s2, %s450
        $region56: #{tpu_custom_call.1} parent=43 // pred_fallthru
          _
        // Predicated region
        $region57: #{tpu_custom_call.1} parent=43 // pred_check
          %p452 = pneg %p133
        $region58: #{tpu_custom_call.1} parent=43 // pred_check_branch
          %454 = sbr.rel (%p452) target = $region60
        $region59: #{tpu_custom_call.1} parent=43 // pred_region
          %p455 = scmp.lt.s32.totalorder %s31, 3
          %s456 = scalar_select %p455, %s31, 3
          %s457 = scalar_lea.vmem %s3, %s456
        $region60: #{tpu_custom_call.1} parent=43 // pred_fallthru
          _
        // Predicated region
        $region61: #{tpu_custom_call.1} parent=43 // pred_check
          %p458 = pneg %p159
        $region62: #{tpu_custom_call.1} parent=43 // pred_check_branch
          %460 = sbr.rel (%p458) target = $region64
        $region63: #{tpu_custom_call.1} parent=43 // pred_region
          %p461 = scmp.lt.s32.totalorder %s31, 3
          %s462 = scalar_select %p461, %s31, 3
          %s463 = smul.addr %s462, 4
          %s464 = smul.addr %s463, 4
          %s465 = scalar_lea.vmem %s4, %s464
        $region64: #{tpu_custom_call.1} parent=43 // pred_fallthru
          _
        // Predicated region
        $region65: #{tpu_custom_call.1} parent=43 // pred_check
          %p466 = pneg %p185
        $region66: #{tpu_custom_call.1} parent=43 // pred_check_branch
          %468 = sbr.rel (%p466) target = $region68
        $region67: #{tpu_custom_call.1} parent=43 // pred_region
          %p469 = scmp.lt.s32.totalorder %s31, 3
          %s470 = scalar_select %p469, %s31, 3
          %s471 = scalar_lea.vmem %s5, %s470
        $region68: #{tpu_custom_call.1} parent=43 // pred_fallthru
          _
        // Predicated region
        $region69: #{tpu_custom_call.1} parent=43 // pred_check
          %p472 = pneg %p211
        $region70: #{tpu_custom_call.1} parent=43 // pred_check_branch
          %474 = sbr.rel (%p472) target = $region72
        $region71: #{tpu_custom_call.1} parent=43 // pred_region
          %p475 = scmp.lt.s32.totalorder %s31, 3
          %s476 = scalar_select %p475, %s31, 3
          %s477 = smul.addr %s476, 4
          %s478 = scalar_lea.vmem %s6, %s477
        $region72: #{tpu_custom_call.1} parent=43 // pred_fallthru
          _
      $region44: #{tpu_custom_call.1} parent=5 // pred_fallthru
        _
      %p479 = scmp.le.s32.totalorder 1, %s23
      %p480 = scmp.lt.s32.totalorder %s23, 9
      %p481 = pnand %p479, %p480
      %p482 = pneg %p481
      // Predicated region
      $region73: #{tpu_custom_call.1} parent=5 // pred_check
        _
      $region74: #{tpu_custom_call.1} parent=5 // pred_check_branch
        %484 = sbr.rel (%p481) target = $region76
      $region75: #{tpu_custom_call.1} parent=5 // pred_region
        %s485 = ssub.s32 %s23, 1
        %p486 = scmp.lt.s32.totalorder %s32, 1
        %s487 = scalar_select %p486, %s32, 1
        %s488 = smul.addr %s487, 8
        %s489 = scalar_lea.vmem %s0, %s488
        %p490 = pneg %p61
        %p491 = pneg %p58
        %p492 = scmp.lt.s32.totalorder %s32, 1
        %s493 = scalar_select %p492, %s32, 1
        %s494 = smul.addr %s493, 8
        %s495 = scalar_lea.vmem %s1, %s494
        %p496 = pneg %p87
        %p497 = pneg %p84
        %p498 = scmp.lt.s32.totalorder %s33, 3
        %s499 = scalar_select %p498, %s33, 3
        %s500 = smul.addr %s499, 4
        %s501 = smul.addr %s500, 4
        %s502 = scalar_lea.vmem %s2, %s501
        %p503 = pneg %p113
        %p504 = pneg %p110
        %p505 = scmp.lt.s32.totalorder %s33, 3
        %s506 = scalar_select %p505, %s33, 3
        %s507 = scalar_lea.vmem %s3, %s506
        %p508 = pneg %p139
        %p509 = pneg %p136
        %p510 = scmp.lt.s32.totalorder %s33, 3
        %s511 = scalar_select %p510, %s33, 3
        %s512 = smul.addr %s511, 4
        %s513 = smul.addr %s512, 4
        %s514 = scalar_lea.vmem %s4, %s513
        %p515 = pneg %p165
        %p516 = pneg %p162
        %p517 = scmp.lt.s32.totalorder %s33, 3
        %s518 = scalar_select %p517, %s33, 3
        %s519 = scalar_lea.vmem %s5, %s518
        %p520 = pneg %p191
        %p521 = pneg %p188
        %p522 = scmp.lt.s32.totalorder %s33, 3
        %s523 = scalar_select %p522, %s33, 3
        %s524 = smul.addr %s523, 4
        %s525 = scalar_lea.vmem %s6, %s524
        %p526 = pneg %p217
        %p527 = pneg %p214
        %p528 = pneg %p238
        %p529 = pneg %p235
        %p530 = pneg %p259
        %p531 = pneg %p256
        %p532 = pneg %p280
        %p533 = pneg %p277
        %p534 = pneg %p301
        %p535 = pneg %p298
        %p536 = pneg %p322
        %p537 = pneg %p319
        %p538 = pneg %p343
        %p539 = pneg %p340
        %p540 = pneg %p364
        %p541 = pneg %p361
        %p542 = pneg %p390
        %p543 = pneg %p387
        %s544 = sand.u32 %s377, 1
        %s545 = scalar_lea.sflag [#allocation4], %s544
        %s546 = sand.u32 %s377, 1
        %s547 = smul.addr %s546, 8
        %s548 = scalar_lea.vmem [#allocation3], %s547
        %p549 = scmp.lt.s32.totalorder %s32, 1
        %s550 = scalar_select %p549, %s32, 1
        %s551 = smul.addr %s550, 8
        %s552 = scalar_lea.vmem %s0, %s551
        %p553 = scmp.lt.s32.totalorder %s32, 1
        %s554 = scalar_select %p553, %s32, 1
        %s555 = smul.addr %s554, 8
        %s556 = scalar_lea.vmem %s1, %s555
        %p557 = scmp.lt.s32.totalorder %s33, 3
        %s558 = scalar_select %p557, %s33, 3
        %s559 = smul.addr %s558, 4
        %s560 = smul.addr %s559, 4
        %s561 = scalar_lea.vmem %s2, %s560
        %p562 = scmp.lt.s32.totalorder %s33, 3
        %s563 = scalar_select %p562, %s33, 3
        %s564 = scalar_lea.vmem %s3, %s563
        %p565 = scmp.lt.s32.totalorder %s33, 3
        %s566 = scalar_select %p565, %s33, 3
        %s567 = smul.addr %s566, 4
        %s568 = smul.addr %s567, 4
        %s569 = scalar_lea.vmem %s4, %s568
        %p570 = scmp.lt.s32.totalorder %s33, 3
        %s571 = scalar_select %p570, %s33, 3
        %s572 = scalar_lea.vmem %s5, %s571
        %p573 = scmp.lt.s32.totalorder %s33, 3
        %s574 = scalar_select %p573, %s33, 3
        %s575 = smul.addr %s574, 4
        %s576 = scalar_lea.vmem %s6, %s575
        %p578 = scmp.eq.s32.totalorder %s33, 0
        // Predicated region
        $region77: #{tpu_custom_call.1} parent=75 // pred_check
          %p579 = pneg %p578
        $region78: #{tpu_custom_call.1} parent=75 // pred_check_branch
          %581 = sbr.rel (%p579) target = $region80
        $region79: #{tpu_custom_call.1} parent=75 // pred_region
          %vm582 = vcmask 261120
          %583 = vst.msk [vmem:[#allocation2] sm:$0xff] %vm582, 0.0
        $region80: #{tpu_custom_call.1} parent=75 // pred_fallthru
          _
        %v584 = vld [vmem:[%s552] sm:$0xff]
        %v585 = vld [vmem:[%s556] sm:$0xff]
        %v586 = vpack.c.bf16 %v584, %v584
        %v587 = vpack.c.bf16 %v585, %v585
        %v588 = vld [vmem:[%s561] sm:$0xf]
        %v589 = vld [vmem:[%s561 + $0x4] sm:$0xf]
        %v590 = vld [vmem:[%s561 + $0x8] sm:$0xf]
        %v591 = vld [vmem:[%s561 + $0xc] sm:$0xf]
        %v592 = vld [vmem:[%s564] sm:$0x1]
        %v594 = vlaneseq
        %v595 = vshrl.u32 %v594, 7
        %v596 = vsub.s32 0, %v595
        %v597 = vrot.slane %v592, %v596
        %v603 = vunpack.c.l.b16 %v588
        %v604 = vunpack.c.l.b16 %v589
        %v605 = vunpack.c.l.b16 %v590
        %v606 = vunpack.c.l.b16 %v591
        %v607 = vpack.c.b16 %v604, %v603
        %v608 = vpack.c.b16 %v606, %v605
        %vm611 = vcmask 261120
        %v613 = vsel %vm611, %v586, 0
        %615 = vmatprep.subr.bf16.mxu0 0
        %616 = vmatpush1.bf16.msra.mxu0 %v607
        %617 = vmatprep.subr.bf16.mxu0 0
        %618 = vmatpush1.bf16.msra.mxu0 %v608
        %619 = vmatprep.subr.bf16.mxu0 0
        %620 = vmatpush1.bf16.msra.mxu0 0
        %621 = vmatprep.subr.bf16.mxu0 0
        %622 = vmatpush1.bf16.msra.mxu0 0
        %623 = vmatprep.subr.bf16.mxu0 0
        %624 = vmatpush1.bf16.msra.mxu0 0
        %625 = vmatprep.subr.bf16.mxu0 0
        %626 = vmatpush1.bf16.msra.mxu0 0
        %627 = vmatprep.subr.bf16.mxu0 0
        %628 = vmatpush1.bf16.msra.mxu0 0
        %629 = vmatprep.subr.bf16.mxu0 0
        %630 = vmatpush1.bf16.msra.mxu0 0
        %631 = vmatprep.subr.bf16.mxu0 0
        %632 = vmatpush1.bf16.msra.mxu0 0
        %633 = vmatprep.subr.bf16.mxu0 0
        %634 = vmatpush1.bf16.msra.mxu0 0
        %635 = vmatprep.subr.bf16.mxu0 0
        %636 = vmatpush1.bf16.msra.mxu0 0
        %637 = vmatprep.subr.bf16.mxu0 0
        %638 = vmatpush1.bf16.msra.mxu0 0
        %639 = vmatprep.subr.bf16.mxu0 0
        %640 = vmatpush1.bf16.msra.mxu0 0
        %641 = vmatprep.subr.bf16.mxu0 0
        %642 = vmatpush1.bf16.msra.mxu0 0
        %643 = vmatprep.subr.bf16.mxu0 0
        %644 = vmatpush1.bf16.msra.mxu0 0
        %645 = vmatprep.subr.bf16.mxu0 0
        %646 = vmatpush1.bf16.msra.mxu0 0
        %647 = vmatprep.mubr.bf16.mxu0 0
        %648 = vmatmul.mubr.bf16.gmra.mrb[0].mxu0 %v613
        %v649 = vpop.f32.mrb[0].mxu0
        %v650 = vadd.f32 %v597, %v649
        %v651 = vpop.f32.mrb[0].mxu0
        %v652 = vpop.f32.mrb[0].mxu0
        %v653 = vpop.f32.mrb[0].mxu0
        %654 = vdwg.mxu0
        %v655 = vld [vmem:[%s569] sm:$0xf]
        %v656 = vld [vmem:[%s569 + $0x4] sm:$0xf]
        %v657 = vld [vmem:[%s569 + $0x8] sm:$0xf]
        %v658 = vld [vmem:[%s569 + $0xc] sm:$0xf]
        %v659 = vld [vmem:[%s572] sm:$0x1]
        %v661 = vlaneseq
        %v662 = vshrl.u32 %v661, 7
        %v663 = vsub.s32 0, %v662
        %v664 = vrot.slane %v659, %v663
        %v670 = vunpack.c.l.b16 %v655
        %v671 = vunpack.c.l.b16 %v656
        %v672 = vunpack.c.l.b16 %v657
        %v673 = vunpack.c.l.b16 %v658
        %v674 = vpack.c.b16 %v671, %v670
        %v675 = vpack.c.b16 %v673, %v672
        %v679 = vsel %vm611, %v587, 0
        %681 = vmatprep.subr.bf16.mxu0 0
        %682 = vmatpush1.bf16.msra.mxu0 %v674
        %683 = vmatprep.subr.bf16.mxu0 0
        %684 = vmatpush1.bf16.msra.mxu0 %v675
        %685 = vmatprep.subr.bf16.mxu0 0
        %686 = vmatpush1.bf16.msra.mxu0 0
        %687 = vmatprep.subr.bf16.mxu0 0
        %688 = vmatpush1.bf16.msra.mxu0 0
        %689 = vmatprep.subr.bf16.mxu0 0
        %690 = vmatpush1.bf16.msra.mxu0 0
        %691 = vmatprep.subr.bf16.mxu0 0
        %692 = vmatpush1.bf16.msra.mxu0 0
        %693 = vmatprep.subr.bf16.mxu0 0
        %694 = vmatpush1.bf16.msra.mxu0 0
        %695 = vmatprep.subr.bf16.mxu0 0
        %696 = vmatpush1.bf16.msra.mxu0 0
        %697 = vmatprep.subr.bf16.mxu0 0
        %698 = vmatpush1.bf16.msra.mxu0 0
        %699 = vmatprep.subr.bf16.mxu0 0
        %700 = vmatpush1.bf16.msra.mxu0 0
        %701 = vmatprep.subr.bf16.mxu0 0
        %702 = vmatpush1.bf16.msra.mxu0 0
        %703 = vmatprep.subr.bf16.mxu0 0
        %704 = vmatpush1.bf16.msra.mxu0 0
        %705 = vmatprep.subr.bf16.mxu0 0
        %706 = vmatpush1.bf16.msra.mxu0 0
        %707 = vmatprep.subr.bf16.mxu0 0
        %708 = vmatpush1.bf16.msra.mxu0 0
        %709 = vmatprep.subr.bf16.mxu0 0
        %710 = vmatpush1.bf16.msra.mxu0 0
        %711 = vmatprep.subr.bf16.mxu0 0
        %712 = vmatpush1.bf16.msra.mxu0 0
        %713 = vmatprep.mubr.bf16.mxu0 0
        %714 = vmatmul.mubr.bf16.gmra.mrb[0].mxu0 %v679
        %v715 = vpop.f32.mrb[0].mxu0
        %v716 = vadd.f32 %v664, %v715
        %v717 = vpop.f32.mrb[0].mxu0
        %v718 = vpop.f32.mrb[0].mxu0
        %v719 = vpop.f32.mrb[0].mxu0
        %720 = vdwg.mxu0
        %v721 = vpack.c.bf16 %v650, %v650
        %v722 = vpack.c.bf16 %v716, %v716
        %vm723 = vcmask 64512
        %v725 = vsel %vm723, %v721, 0
        %v728 = vsel %vm723, %v722, 0
        %730 = vmatprep.subr.bf16.mxu0 0
        %731 = vmatpush1.bf16.xpose.msra.mxu0 %v728
        %732 = vmatprep.subr.bf16.mxu0 0
        %733 = vmatpush1.bf16.xpose.msra.mxu0 0
        %734 = vmatprep.subr.bf16.mxu0 0
        %735 = vmatpush1.bf16.xpose.msra.mxu0 0
        %736 = vmatprep.subr.bf16.mxu0 0
        %737 = vmatpush1.bf16.xpose.msra.mxu0 0
        %738 = vmatprep.subr.bf16.mxu0 0
        %739 = vmatpush1.bf16.xpose.msra.mxu0 0
        %740 = vmatprep.subr.bf16.mxu0 0
        %741 = vmatpush1.bf16.xpose.msra.mxu0 0
        %742 = vmatprep.subr.bf16.mxu0 0
        %743 = vmatpush1.bf16.xpose.msra.mxu0 0
        %744 = vmatprep.subr.bf16.mxu0 0
        %745 = vmatpush1.bf16.xpose.msra.mxu0 0
        %746 = vmatprep.subr.bf16.mxu0 0
        %747 = vmatpush1.bf16.xpose.msra.mxu0 0
        %748 = vmatprep.subr.bf16.mxu0 0
        %749 = vmatpush1.bf16.xpose.msra.mxu0 0
        %750 = vmatprep.subr.bf16.mxu0 0
        %751 = vmatpush1.bf16.xpose.msra.mxu0 0
        %752 = vmatprep.subr.bf16.mxu0 0
        %753 = vmatpush1.bf16.xpose.msra.mxu0 0
        %754 = vmatprep.subr.bf16.mxu0 0
        %755 = vmatpush1.bf16.xpose.msra.mxu0 0
        %756 = vmatprep.subr.bf16.mxu0 0
        %757 = vmatpush1.bf16.xpose.msra.mxu0 0
        %758 = vmatprep.subr.bf16.mxu0 0
        %759 = vmatpush1.bf16.xpose.msra.mxu0 0
        %760 = vmatprep.subr.bf16.mxu0 0
        %761 = vmatpush1.bf16.xpose.msra.mxu0 0
        %762 = vmatprep.mubr.bf16.mxu0 0
        %763 = vmatmul.mubr.bf16.gmra.mrb[0].mxu0 %v725
        %v764 = vpop.f32.mrb[0].mxu0
        %v765 = vadd.f32 0.0, %v764
        %v766 = vpop.f32.mrb[0].mxu0
        %v767 = vpop.f32.mrb[0].mxu0
        %v768 = vpop.f32.mrb[0].mxu0
        %769 = vdwg.mxu0
        %v770 = vmul.f32 %v765, 0.35355338
        %v771 = vsel %vm723, %v770, -inf
        %772 = vmax.xlane.f32.xlu0 %v771
        %v773 = vpop.xlane.xlu0 %772
        %v774 = vsub.f32 %v770, %v773
        %v775 = vmul.f32 %v774, 1.442695
        %v776 = vpow.pop %v775
        %v777 = vsel %vm723, %v776, 0.0
        %778 = vadd.xlane.f32.xlu0 %v777
        %v779 = vpop.xlane.xlu0 %778
        %v780 = vrcp.pop %v779
        %v781 = vmul.f32 %v776, %v780
        %v782 = vpack.c.bf16 %v781, %v781
        %784 = vrot.lane.b32.xlu0 %v722, 120
        %v785 = vpop.permute.xlu0 %784
        %v787 = vsel %vm723, %v782, 0
        %vm789 = vcmask 1043456
        %v791 = vsel %vm789, %v785, 0
        %793 = vmatprep.subr.bf16.mxu0 0
        %794 = vmatpush1.bf16.msra.mxu0 %v791
        %795 = vmatprep.subr.bf16.mxu0 0
        %796 = vmatpush1.bf16.msra.mxu0 0
        %797 = vmatprep.subr.bf16.mxu0 0
        %798 = vmatpush1.bf16.msra.mxu0 0
        %799 = vmatprep.subr.bf16.mxu0 0
        %800 = vmatpush1.bf16.msra.mxu0 0
        %801 = vmatprep.subr.bf16.mxu0 0
        %802 = vmatpush1.bf16.msra.mxu0 0
        %803 = vmatprep.subr.bf16.mxu0 0
        %804 = vmatpush1.bf16.msra.mxu0 0
        %805 = vmatprep.subr.bf16.mxu0 0
        %806 = vmatpush1.bf16.msra.mxu0 0
        %807 = vmatprep.subr.bf16.mxu0 0
        %808 = vmatpush1.bf16.msra.mxu0 0
        %809 = vmatprep.subr.bf16.mxu0 0
        %810 = vmatpush1.bf16.msra.mxu0 0
        %811 = vmatprep.subr.bf16.mxu0 0
        %812 = vmatpush1.bf16.msra.mxu0 0
        %813 = vmatprep.subr.bf16.mxu0 0
        %814 = vmatpush1.bf16.msra.mxu0 0
        %815 = vmatprep.subr.bf16.mxu0 0
        %816 = vmatpush1.bf16.msra.mxu0 0
        %817 = vmatprep.subr.bf16.mxu0 0
        %818 = vmatpush1.bf16.msra.mxu0 0
        %819 = vmatprep.subr.bf16.mxu0 0
        %820 = vmatpush1.bf16.msra.mxu0 0
        %821 = vmatprep.subr.bf16.mxu0 0
        %822 = vmatpush1.bf16.msra.mxu0 0
        %823 = vmatprep.subr.bf16.mxu0 0
        %824 = vmatpush1.bf16.msra.mxu0 0
        %825 = vmatprep.mubr.bf16.mxu0 0
        %826 = vmatmul.mubr.bf16.gmra.mrb[0].mxu0 %v787
        %v827 = vpop.f32.mrb[0].mxu0
        %v828 = vadd.f32 0.0, %v827
        %v829 = vpop.f32.mrb[0].mxu0
        %v830 = vpop.f32.mrb[0].mxu0
        %v831 = vpop.f32.mrb[0].mxu0
        %832 = vdwg.mxu0
        %v833 = vld [vmem:[#allocation2] sm:$0xff]
        %v834 = vpack.c.bf16 %v828, %v828
        %v835 = vld [vmem:[%s576] sm:$0xf]
        %v837 = vsel %vm723, %v834, 0
        %v840 = vsel %vm789, %v835, 0
        %842 = vmatprep.subr.bf16.mxu0 0
        %843 = vmatpush1.bf16.msra.mxu0 %v840
        %844 = vmatprep.subr.bf16.mxu0 0
        %845 = vmatpush1.bf16.msra.mxu0 0
        %846 = vmatprep.subr.bf16.mxu0 0
        %847 = vmatpush1.bf16.msra.mxu0 0
        %848 = vmatprep.subr.bf16.mxu0 0
        %849 = vmatpush1.bf16.msra.mxu0 0
        %850 = vmatprep.subr.bf16.mxu0 0
        %851 = vmatpush1.bf16.msra.mxu0 0
        %852 = vmatprep.subr.bf16.mxu0 0
        %853 = vmatpush1.bf16.msra.mxu0 0
        %854 = vmatprep.subr.bf16.mxu0 0
        %855 = vmatpush1.bf16.msra.mxu0 0
        %856 = vmatprep.subr.bf16.mxu0 0
        %857 = vmatpush1.bf16.msra.mxu0 0
        %858 = vmatprep.subr.bf16.mxu0 0
        %859 = vmatpush1.bf16.msra.mxu0 0
        %860 = vmatprep.subr.bf16.mxu0 0
        %861 = vmatpush1.bf16.msra.mxu0 0
        %862 = vmatprep.subr.bf16.mxu0 0
        %863 = vmatpush1.bf16.msra.mxu0 0
        %864 = vmatprep.subr.bf16.mxu0 0
        %865 = vmatpush1.bf16.msra.mxu0 0
        %866 = vmatprep.subr.bf16.mxu0 0
        %867 = vmatpush1.bf16.msra.mxu0 0
        %868 = vmatprep.subr.bf16.mxu0 0
        %869 = vmatpush1.bf16.msra.mxu0 0
        %870 = vmatprep.subr.bf16.mxu0 0
        %871 = vmatpush1.bf16.msra.mxu0 0
        %872 = vmatprep.subr.bf16.mxu0 0
        %873 = vmatpush1.bf16.msra.mxu0 0
        %874 = vmatprep.mubr.bf16.mxu0 0
        %875 = vmatmul.mubr.bf16.gmra.mrb[0].mxu0 %v837
        %v876 = vpop.f32.mrb[0].mxu0
        %v877 = vadd.f32 0.0, %v876
        %v878 = vpop.f32.mrb[0].mxu0
        %v879 = vpop.f32.mrb[0].mxu0
        %v880 = vpop.f32.mrb[0].mxu0
        %881 = vdwg.mxu0
        %v882 = vadd.f32 %v833, %v877
        %883 = vst.msk [vmem:[#allocation2] sm:$0xff] %vm611, %v882
        %p884 = scmp.eq.s32.totalorder %s33, 3
        // Predicated region
        $region81: #{tpu_custom_call.1} parent=75 // pred_check
          %p885 = pneg %p884
        $region82: #{tpu_custom_call.1} parent=75 // pred_check_branch
          %887 = sbr.rel (%p885) target = $region84
        $region83: #{tpu_custom_call.1} parent=75 // pred_region
          %v888 = vld [vmem:[%s11] sm:$0x7]
          %v889 = vld [vmem:[%s12] sm:$0x7]
          %v890 = vld [vmem:[%s13] sm:$0x7]
          %v891 = vld [vmem:[#allocation2] sm:$0xff]
          %v892 = vlaneseq
          %v893 = vshrl.u32 %v892, 7
          %v894 = vsub.s32 0, %v893
          %v895 = vrot.slane %v888, %v894
          %v896 = vadd.f32 %v891, %v895
          %v897 = vadd.f32 %v584, %v896
          %v898 = vsel %vm611, %v897, 0.0
          %899 = vadd.xlane.f32.xlu0 %v898
          %v900 = vpop.xlane.xlu0 %899
          %v901 = vrcp.pop 32.0
          %v902 = vmul.f32 %v900, %v901
          %v903 = vsub.f32 %v897, %v902
          %v904 = vmul.f32 %v903, %v903
          %v905 = vsel %vm611, %v904, 0.0
          %906 = vadd.xlane.f32.xlu0 %v905
          %v907 = vpop.xlane.xlu0 %906
          %v908 = vmul.f32 %v907, %v901
          %v909 = vadd.f32 %v908, 1e-06
          %v910 = vrsqrt.pop %v909
          %v911 = vmul.f32 %v903, %v910
          %v912 = vlaneseq
          %v913 = vshrl.u32 %v912, 7
          %v914 = vsub.s32 0, %v913
          %v915 = vrot.slane %v889, %v914
          %v916 = vmul.f32 %v911, %v915
          %v917 = vlaneseq
          %v918 = vshrl.u32 %v917, 7
          %v919 = vsub.s32 0, %v918
          %v920 = vrot.slane %v890, %v919
          %v921 = vadd.f32 %v916, %v920
          %v922 = vpack.c.bf16 %v921, %v921
          %v923 = vld [vmem:[%s7] sm:$0xf]
          %v924 = vld [vmem:[%s7 + $0x4] sm:$0xf]
          %v925 = vld [vmem:[%s7 + $0x8] sm:$0xf]
          %v926 = vld [vmem:[%s7 + $0xc] sm:$0xf]
          %v927 = vld [vmem:[%s8] sm:$0x1]
          %v929 = vlaneseq
          %v930 = vshrl.u32 %v929, 7
          %v931 = vsub.s32 0, %v930
          %v932 = vrot.slane %v927, %v931
          %v938 = vunpack.c.l.b16 %v923
          %v939 = vunpack.c.l.b16 %v924
          %v940 = vunpack.c.l.b16 %v925
          %v941 = vunpack.c.l.b16 %v926
          %v942 = vpack.c.b16 %v939, %v938
          %v943 = vpack.c.b16 %v941, %v940
          %v947 = vsel %vm611, %v922, 0
          %949 = vmatprep.subr.bf16.mxu0 0
          %950 = vmatpush1.bf16.msra.mxu0 %v942
          %951 = vmatprep.subr.bf16.mxu0 0
          %952 = vmatpush1.bf16.msra.mxu0 %v943
          %953 = vmatprep.subr.bf16.mxu0 0
          %954 = vmatpush1.bf16.msra.mxu0 0
          %955 = vmatprep.subr.bf16.mxu0 0
          %956 = vmatpush1.bf16.msra.mxu0 0
          %957 = vmatprep.subr.bf16.mxu0 0
          %958 = vmatpush1.bf16.msra.mxu0 0
          %959 = vmatprep.subr.bf16.mxu0 0
          %960 = vmatpush1.bf16.msra.mxu0 0
          %961 = vmatprep.subr.bf16.mxu0 0
          %962 = vmatpush1.bf16.msra.mxu0 0
          %963 = vmatprep.subr.bf16.mxu0 0
          %964 = vmatpush1.bf16.msra.mxu0 0
          %965 = vmatprep.subr.bf16.mxu0 0
          %966 = vmatpush1.bf16.msra.mxu0 0
          %967 = vmatprep.subr.bf16.mxu0 0
          %968 = vmatpush1.bf16.msra.mxu0 0
          %969 = vmatprep.subr.bf16.mxu0 0
          %970 = vmatpush1.bf16.msra.mxu0 0
          %971 = vmatprep.subr.bf16.mxu0 0
          %972 = vmatpush1.bf16.msra.mxu0 0
          %973 = vmatprep.subr.bf16.mxu0 0
          %974 = vmatpush1.bf16.msra.mxu0 0
          %975 = vmatprep.subr.bf16.mxu0 0
          %976 = vmatpush1.bf16.msra.mxu0 0
          %977 = vmatprep.subr.bf16.mxu0 0
          %978 = vmatpush1.bf16.msra.mxu0 0
          %979 = vmatprep.subr.bf16.mxu0 0
          %980 = vmatpush1.bf16.msra.mxu0 0
          %981 = vmatprep.mubr.bf16.mxu0 0
          %982 = vmatmul.mubr.bf16.gmra.mrb[0].mxu0 %v947
          %v983 = vpop.f32.mrb[0].mxu0
          %v984 = vadd.f32 %v932, %v983
          %v985 = vpop.f32.mrb[0].mxu0
          %v986 = vpop.f32.mrb[0].mxu0
          %v987 = vpop.f32.mrb[0].mxu0
          %988 = vdwg.mxu0
          %v989 = vmax.f32 %v984, 0.0
          %v990 = vpack.c.bf16 %v989, %v989
          %v991 = vld [vmem:[%s9] sm:$0xf]
          %v992 = vld [vmem:[%s9 + $0x4] sm:$0xf]
          %v993 = vld [vmem:[%s9 + $0x8] sm:$0xf]
          %v994 = vld [vmem:[%s9 + $0xc] sm:$0xf]
          %v995 = vld [vmem:[%s9 + $0x10] sm:$0xf]
          %v996 = vld [vmem:[%s9 + $0x14] sm:$0xf]
          %v997 = vld [vmem:[%s9 + $0x18] sm:$0xf]
          %v998 = vld [vmem:[%s9 + $0x1c] sm:$0xf]
          %v999 = vlaneseq
          %v1000 = vshrl.u32 %v999, 7
          %v1001 = vsub.s32 1, %v1000
          %v1002 = vrot.slane %v888, %v1001
          %v1011 = vunpack.c.l.b16 %v991
          %v1012 = vunpack.c.l.b16 %v992
          %v1013 = vunpack.c.l.b16 %v993
          %v1014 = vunpack.c.l.b16 %v994
          %v1015 = vunpack.c.l.b16 %v995
          %v1016 = vunpack.c.l.b16 %v996
          %v1017 = vunpack.c.l.b16 %v997
          %v1018 = vunpack.c.l.b16 %v998
          %v1019 = vpack.c.b16 %v1012, %v1011
          %v1020 = vpack.c.b16 %v1014, %v1013
          %v1021 = vpack.c.b16 %v1016, %v1015
          %v1022 = vpack.c.b16 %v1018, %v1017
          %vm1027 = vcmask 523264
          %v1029 = vsel %vm1027, %v990, 0
          %1031 = vmatprep.subr.bf16.mxu0 0
          %1032 = vmatpush1.bf16.msra.mxu0 %v1019
          %1033 = vmatprep.subr.bf16.mxu0 0
          %1034 = vmatpush1.bf16.msra.mxu0 %v1020
          %1035 = vmatprep.subr.bf16.mxu0 0
          %1036 = vmatpush1.bf16.msra.mxu0 %v1021
          %1037 = vmatprep.subr.bf16.mxu0 0
          %1038 = vmatpush1.bf16.msra.mxu0 %v1022
          %1039 = vmatprep.subr.bf16.mxu0 0
          %1040 = vmatpush1.bf16.msra.mxu0 0
          %1041 = vmatprep.subr.bf16.mxu0 0
          %1042 = vmatpush1.bf16.msra.mxu0 0
          %1043 = vmatprep.subr.bf16.mxu0 0
          %1044 = vmatpush1.bf16.msra.mxu0 0
          %1045 = vmatprep.subr.bf16.mxu0 0
          %1046 = vmatpush1.bf16.msra.mxu0 0
          %1047 = vmatprep.subr.bf16.mxu0 0
          %1048 = vmatpush1.bf16.msra.mxu0 0
          %1049 = vmatprep.subr.bf16.mxu0 0
          %1050 = vmatpush1.bf16.msra.mxu0 0
          %1051 = vmatprep.subr.bf16.mxu0 0
          %1052 = vmatpush1.bf16.msra.mxu0 0
          %1053 = vmatprep.subr.bf16.mxu0 0
          %1054 = vmatpush1.bf16.msra.mxu0 0
          %1055 = vmatprep.subr.bf16.mxu0 0
          %1056 = vmatpush1.bf16.msra.mxu0 0
          %1057 = vmatprep.subr.bf16.mxu0 0
          %1058 = vmatpush1.bf16.msra.mxu0 0
          %1059 = vmatprep.subr.bf16.mxu0 0
          %1060 = vmatpush1.bf16.msra.mxu0 0
          %1061 = vmatprep.subr.bf16.mxu0 0
          %1062 = vmatpush1.bf16.msra.mxu0 0
          %1063 = vmatprep.mubr.bf16.mxu0 0
          %1064 = vmatmul.mubr.bf16.gmra.mrb[0].mxu0 %v1029
          %v1065 = vpop.f32.mrb[0].mxu0
          %v1066 = vadd.f32 %v1002, %v1065
          %v1067 = vpop.f32.mrb[0].mxu0
          %v1068 = vpop.f32.mrb[0].mxu0
          %v1069 = vpop.f32.mrb[0].mxu0
          %1070 = vdwg.mxu0
          %v1071 = vadd.f32 %v921, %v1066
          %v1072 = vsel %vm611, %v1071, 0.0
          %1073 = vadd.xlane.f32.xlu0 %v1072
          %v1074 = vpop.xlane.xlu0 %1073
          %v1075 = vmul.f32 %v1074, %v901
          %v1076 = vsub.f32 %v1071, %v1075
          %v1077 = vmul.f32 %v1076, %v1076
          %v1078 = vsel %vm611, %v1077, 0.0
          %1079 = vadd.xlane.f32.xlu0 %v1078
          %v1080 = vpop.xlane.xlu0 %1079
          %v1081 = vmul.f32 %v1080, %v901
          %v1082 = vadd.f32 %v1081, 1e-06
          %v1083 = vrsqrt.pop %v1082
          %v1084 = vmul.f32 %v1076, %v1083
          %v1085 = vlaneseq
          %v1086 = vshrl.u32 %v1085, 7
          %v1087 = vsub.s32 1, %v1086
          %v1088 = vrot.slane %v889, %v1087
          %v1089 = vmul.f32 %v1084, %v1088
          %v1090 = vlaneseq
          %v1091 = vshrl.u32 %v1090, 7
          %v1092 = vsub.s32 1, %v1091
          %v1093 = vrot.slane %v890, %v1092
          %v1094 = vadd.f32 %v1089, %v1093
          %v1095 = vpack.c.bf16 %v1094, %v1094
          %v1096 = vld [vmem:[%s10] sm:$0xf]
          %v1097 = vld [vmem:[%s10 + $0x4] sm:$0xf]
          %v1098 = vld [vmem:[%s10 + $0x8] sm:$0xf]
          %v1099 = vld [vmem:[%s10 + $0xc] sm:$0xf]
          %v1100 = vlaneseq
          %v1101 = vshrl.u32 %v1100, 7
          %v1102 = vsub.s32 2, %v1101
          %v1103 = vrot.slane %v888, %v1102
          %v1108 = vunpack.c.l.b16 %v1096
          %v1109 = vunpack.c.l.b16 %v1097
          %v1110 = vunpack.c.l.b16 %v1098
          %v1111 = vunpack.c.l.b16 %v1099
          %v1112 = vpack.c.b16 %v1109, %v1108
          %v1113 = vpack.c.b16 %v1111, %v1110
          %v1117 = vsel %vm611, %v1095, 0
          %1119 = vmatprep.subr.bf16.mxu0 0
          %1120 = vmatpush1.bf16.msra.mxu0 %v1112
          %1121 = vmatprep.subr.bf16.mxu0 0
          %1122 = vmatpush1.bf16.msra.mxu0 %v1113
          %1123 = vmatprep.subr.bf16.mxu0 0
          %1124 = vmatpush1.bf16.msra.mxu0 0
          %1125 = vmatprep.subr.bf16.mxu0 0
          %1126 = vmatpush1.bf16.msra.mxu0 0
          %1127 = vmatprep.subr.bf16.mxu0 0
          %1128 = vmatpush1.bf16.msra.mxu0 0
          %1129 = vmatprep.subr.bf16.mxu0 0
          %1130 = vmatpush1.bf16.msra.mxu0 0
          %1131 = vmatprep.subr.bf16.mxu0 0
          %1132 = vmatpush1.bf16.msra.mxu0 0
          %1133 = vmatprep.subr.bf16.mxu0 0
          %1134 = vmatpush1.bf16.msra.mxu0 0
          %1135 = vmatprep.subr.bf16.mxu0 0
          %1136 = vmatpush1.bf16.msra.mxu0 0
          %1137 = vmatprep.subr.bf16.mxu0 0
          %1138 = vmatpush1.bf16.msra.mxu0 0
          %1139 = vmatprep.subr.bf16.mxu0 0
          %1140 = vmatpush1.bf16.msra.mxu0 0
          %1141 = vmatprep.subr.bf16.mxu0 0
          %1142 = vmatpush1.bf16.msra.mxu0 0
          %1143 = vmatprep.subr.bf16.mxu0 0
          %1144 = vmatpush1.bf16.msra.mxu0 0
          %1145 = vmatprep.subr.bf16.mxu0 0
          %1146 = vmatpush1.bf16.msra.mxu0 0
          %1147 = vmatprep.subr.bf16.mxu0 0
          %1148 = vmatpush1.bf16.msra.mxu0 0
          %1149 = vmatprep.subr.bf16.mxu0 0
          %1150 = vmatpush1.bf16.msra.mxu0 0
          %1151 = vmatprep.mubr.bf16.mxu0 0
          %1152 = vmatmul.mubr.bf16.gmra.mrb[0].mxu0 %v1117
          %v1153 = vpop.f32.mrb[0].mxu0
          %v1154 = vadd.f32 %v1103, %v1153
          %v1155 = vpop.f32.mrb[0].mxu0
          %v1156 = vpop.f32.mrb[0].mxu0
          %v1157 = vpop.f32.mrb[0].mxu0
          %1158 = vdwg.mxu0
          %v1159 = vsel %vm611, %v1154, 0.0
          %1160 = vadd.xlane.f32.xlu0 %v1159
          %v1161 = vpop.xlane.xlu0 %1160
          %v1162 = vmul.f32 %v1161, %v901
          %v1163 = vsub.f32 %v1154, %v1162
          %v1164 = vmul.f32 %v1163, %v1163
          %v1165 = vsel %vm611, %v1164, 0.0
          %1166 = vadd.xlane.f32.xlu0 %v1165
          %v1167 = vpop.xlane.xlu0 %1166
          %v1168 = vmul.f32 %v1167, %v901
          %v1169 = vadd.f32 %v1168, 1e-06
          %v1170 = vrsqrt.pop %v1169
          %v1171 = vmul.f32 %v1163, %v1170
          %v1172 = vlaneseq
          %v1173 = vshrl.u32 %v1172, 7
          %v1174 = vsub.s32 2, %v1173
          %v1175 = vrot.slane %v889, %v1174
          %v1176 = vmul.f32 %v1171, %v1175
          %v1177 = vlaneseq
          %v1178 = vshrl.u32 %v1177, 7
          %v1179 = vsub.s32 2, %v1178
          %v1180 = vrot.slane %v890, %v1179
          %v1181 = vadd.f32 %v1176, %v1180
          %1182 = vst.msk [vmem:[%s548] sm:$0xff] %vm611, %v1181
        $region84: #{tpu_custom_call.1} parent=75 // pred_fallthru
          _
        %s1183 = sand.u32 %s377, 1
        %s1184 = scalar_lea.sflag [#allocation4], %s1183
        %s1185 = sand.u32 %s377, 1
        %s1186 = smul.addr %s1185, 8
        %s1187 = scalar_lea.vmem [#allocation3], %s1186
        // Predicated region
        $region85: #{tpu_custom_call.1} parent=75 // pred_check
          %p1188 = pneg %p387
        $region86: #{tpu_custom_call.1} parent=75 // pred_check_branch
          %1190 = sbr.rel (%p1188) target = $region88
        $region87: #{tpu_custom_call.1} parent=75 // pred_region
          %s1192 = ssub.s32 128, 128
          %1193 = vsyncadd %s1184, %s1192
          %s1194 = smul.addr %s32, 128
          %s1195 = scalar_lea.hbm %s14, %s1194
          %s1197 = sshll.u32 %s1187, 4
          %s1198 = int_to_ptr.vmem [resolvable:$true] %s1197
          %1200 = dma.vmem_to_hbm [thread:$0]  %s1198, 128, %s1195, %s1184
        $region88: #{tpu_custom_call.1} parent=75 // pred_fallthru
          _
      $region76: #{tpu_custom_call.1} parent=5 // pred_fallthru
        _
      %p1201 = scmp.le.s32.totalorder 2, %s23
      // Predicated region
      $region89: #{tpu_custom_call.1} parent=5 // pred_check
        %p1202 = pneg %p1201
      $region90: #{tpu_custom_call.1} parent=5 // pred_check_branch
        %1204 = sbr.rel (%p1202) target = $region92
      $region91: #{tpu_custom_call.1} parent=5 // pred_region
        %s1205 = ssub.s32 %s23, 2
        // Predicated region
        $region93: #{tpu_custom_call.1} parent=91 // pred_check
          %p1206 = pneg %p393
        $region94: #{tpu_custom_call.1} parent=91 // pred_check_branch
          %1208 = sbr.rel (%p1206) target = $region96
        $region95: #{tpu_custom_call.1} parent=91 // pred_region
          %s1209 = sand.u32 %s378, 1
          %s1210 = scalar_lea.sflag [#allocation4], %s1209
          %s1211 = sand.u32 %s378, 1
          %s1212 = smul.addr %s1211, 8
          %s1213 = scalar_lea.vmem [#allocation3], %s1212
          %1214 = dma.done %s1210, 128
        $region96: #{tpu_custom_call.1} parent=91 // pred_fallthru
          _
      $region92: #{tpu_custom_call.1} parent=5 // pred_fallthru
        _
    $region6: #{tpu_custom_call.1} parent=1 // loop_footer
      %s27 = sadd.s32 1, %s23
    $region7: #{tpu_custom_call.1} parent=1 // loop_footer_branch
      %22 = sbr.rel target = $region3
    $region8: #{tpu_custom_call.1} parent=1 // loop_exit
      _
    %1215 = vsyncpa [#allocation4], 1
    %s1216 = scalar_lea.sflag [#allocation4], 1
    %1217 = vsyncpa %s1216, 1

</llo_original>
